<compile_context>
chip_gen: v7x
topology: tpu7x:2x2x1
jax: 0.10.0
libtpu: 0.0.40
codegen_flags: <defaults>
</compile_context>

<pallas_src>
import functools

import jax
import jax.numpy as jnp
from jax.experimental import pallas as pl
from jax.experimental.pallas import tpu as pltpu


def _fast_attn_kernel(x_ref, mask_ref,
                      wq_ref, bq_ref, wqs_ref, bqs_ref,
                      wk_ref, bk_ref, wka_ref, bka_ref,
                      wt_ref, bt_ref, e_ref,
                      o_ref):
    """One batch element per grid step. x_ref is bf16 (S, D); weights feeding the
    MXU are bf16; accumulation and all softmax/elementwise math are f32.
    The 1/sqrt(head_size) score scale is pre-folded into wqs/bqs and wka/bka."""
    x = x_ref[...]                     # (S, D) bf16
    mask = mask_ref[...]               # (S, 1) f32 additive mask (same for all heads)
    E = e_ref[...]                     # (H, D) f32 head-indicator matrix

    # q / k projections: bf16 operands, f32 accumulation              (S, D) f32
    q = jnp.dot(x, wq_ref[...], preferred_element_type=jnp.float32) + bq_ref[...]
    k = jnp.dot(x, wk_ref[...], preferred_element_type=jnp.float32) + bk_ref[...]

    # --- query attention pooling -------------------------------------------
    # fused + pre-scaled score weights: qs = ((x@Wq+bq)@Wqa + bqa)/sqrt(d)  (S, H)
    qs = jnp.dot(x, wqs_ref[...], preferred_element_type=jnp.float32) + bqs_ref[...]
    qs = qs + mask
    qs = qs - jnp.max(qs, axis=0, keepdims=True)
    eq = jnp.exp(qs)                                                  # unnormalized
    inv_lq = pl.reciprocal(jnp.sum(eq, axis=0, keepdims=True), approx=True)  # (1, H)

    # MXU contraction over the sequence axis: (S,H) x (S,D) -> (H, D)
    hd_q = jax.lax.dot_general(eq, q, (((0,), (0,)), ((), ())),
                               preferred_element_type=jnp.float32)
    pooled_q = jnp.sum(E * hd_q, axis=0, keepdims=True)               # (1, D)
    pooled_q = pooled_q * jnp.dot(inv_lq, E, preferred_element_type=jnp.float32)

    mixed_qk = k * pooled_q                                           # (S, D) f32
    mixed_qk_bf = mixed_qk.astype(jnp.bfloat16)

    # --- key attention pooling ---------------------------------------------
    ks = jnp.dot(mixed_qk_bf, wka_ref[...],
                 preferred_element_type=jnp.float32) + bka_ref[...]   # (S, H)
    ks = ks + mask
    ks = ks - jnp.max(ks, axis=0, keepdims=True)
    ek = jnp.exp(ks)
    inv_lk = pl.reciprocal(jnp.sum(ek, axis=0, keepdims=True), approx=True)

    hd_k = jax.lax.dot_general(ek, mixed_qk, (((0,), (0,)), ((), ())),
                               preferred_element_type=jnp.float32)    # (H, D)
    pooled_k = jnp.sum(E * hd_k, axis=0, keepdims=True)               # (1, D)
    pooled_k = pooled_k * jnp.dot(inv_lk, E, preferred_element_type=jnp.float32)

    # --- output --------------------------------------------------------------
    wv = (q * pooled_k).astype(jnp.bfloat16)                          # (S, D)
    out = jnp.dot(wv, wt_ref[...], preferred_element_type=jnp.float32) + bt_ref[...] + q
    o_ref[...] = out.astype(o_ref.dtype)


def multi_head_fast_self_attention(hidden_states, attention_mask, params,
                                   num_attention_heads):
    """hidden_states: (B, S, D); attention_mask: (B, 1, S) additive mask."""
    B, S, D = hidden_states.shape
    H = num_attention_heads
    d = D // H
    assert H * d == D

    wq, bq, wqa, bqa, wk, bk, wka, bka, wt, bt = params
    scale = 1.0 / (d ** 0.5)

    # Fused query-score weights with the attention scale folded in (once, f32).
    wqs = (wq @ wqa) * scale             # (D, H)
    bqs = (bq @ wqa + bqa) * scale       # (H,)
    wka_s = wka * scale                  # (D, H)
    bka_s = bka * scale                  # (H,)

    # bf16 operands feeding the MXU; biases / mask / E stay f32.
    x_bf = hidden_states.astype(jnp.bfloat16)
    wq_b, wk_b, wt_b, wka_b, wqs_b = (a.astype(jnp.bfloat16)
                                      for a in (wq, wk, wt, wka_s, wqs))
    bq2, bk2, bt2, bka2, bqs2 = (b.reshape(1, -1).astype(jnp.float32)
                                 for b in (bq, bk, bt, bka_s, bqs))

    # glue: transpose mask to (B, S, 1) so the kernel adds it with a pure broadcast
    mask_t = jnp.transpose(attention_mask, (0, 2, 1)).astype(jnp.float32)

    # head-expansion indicator matrix: E[h, h*d + j] = 1
    E = jnp.repeat(jnp.eye(H, dtype=jnp.float32), d, axis=1)          # (H, D)

    kernel = functools.partial(_fast_attn_kernel)

    # Grid-invariant operands: constant index_map => DMA'd once; single-buffer
    # them to avoid paying VMEM for an unused second buffer.
    def resident(shape):
        return pl.BlockSpec(shape, lambda b: (0, 0), pipeline_mode=pl.Buffered(1))

    grid_spec = pltpu.PrefetchScalarGridSpec(
        num_scalar_prefetch=0,
        grid=(B,),
        in_specs=[
            pl.BlockSpec((None, S, D), lambda b: (b, 0, 0)),   # x (bf16)
            pl.BlockSpec((None, S, 1), lambda b: (b, 0, 0)),   # mask (transposed)
            resident((D, D)),  # Wq (bf16)
            resident((1, D)),  # bq
            resident((D, H)),  # Wqs = (Wq @ Wqa) * scale (bf16)
            resident((1, H)),  # bqs
            resident((D, D)),  # Wk (bf16)
            resident((1, D)),  # bk
            resident((D, H)),  # Wka * scale (bf16)
            resident((1, H)),  # bka * scale
            resident((D, D)),  # Wt (bf16)
            resident((1, D)),  # bt
            resident((H, D)),  # E
        ],
        out_specs=pl.BlockSpec((None, S, D), lambda b: (b, 0, 0)),
    )

    # Explicit VMEM budget: single-buffered bf16 weights + double-buffered
    # bf16 input / f32 output blocks + a handful of (S, D) f32 intermediates,
    # with 2x headroom, clamped to sane bounds.
    # TODO(synk): for v7x (64 MiB VMEM) at large S*D, switch to a two-pass
    # S-tiled variant (pass 1 accumulates pooled_q/pooled_k per batch, pass 2
    # computes wv @ Wt per S tile) instead of raising this limit further.
    weight_bytes = 3 * D * D * 2 + 2 * D * H * 2 + H * D * 4 + (3 * D + 2 * H) * 4
    act_bytes = 2 * S * D * 2 + 2 * S * D * 4 + 8 * S * D * 4
    vmem_limit = int(min(max(2 * (weight_bytes + act_bytes), 16 << 20), 100 << 20))

    # Advisory cost hint for XLA's scheduler around the custom call.
    flops = B * (6 * S * D * D + 8 * S * D * H)
    bytes_accessed = (B * S * D * 2 + B * S * 4                      # x (bf16) + mask
                      + 3 * D * D * 2 + 2 * D * H * 2 + H * D * 4    # weights + E
                      + B * S * D * 4)                               # output (f32)
    cost = pl.CostEstimate(flops=flops, transcendentals=2 * B * S * H,
                           bytes_accessed=bytes_accessed)

    return pl.pallas_call(
        kernel,
        out_shape=jax.ShapeDtypeStruct((B, S, D), jnp.float32),
        grid_spec=grid_spec,
        compiler_params=pltpu.CompilerParams(
            dimension_semantics=("parallel",),
            vmem_limit_bytes=vmem_limit),
        cost_estimate=cost,
    )(x_bf, mask_t,
      wq_b, bq2, wqs_b, bqs2, wk_b, bk2, wka_b, bka2, wt_b, bt2, E)


def _reference(hidden_states, attention_mask, params, num_attention_heads):
    """Pure-JAX f32 mirror of the PyTorch forward (3-D mask branch), for checking."""
    B, S, D = hidden_states.shape
    H = num_attention_heads
    d = D // H
    wq, bq, wqa, bqa, wk, bk, wka, bka, wt, bt = params

    def t4(x):  # transpose_for_scores
        return jnp.transpose(x.reshape(B, S, H, d), (0, 2, 1, 3))

    mq = hidden_states @ wq + bq
    mk = hidden_states @ wk + bk
    qfs = jnp.transpose(mq @ wqa + bqa, (0, 2, 1)) / (d ** 0.5)     # (B, H, S)
    qfs = qfs + attention_mask
    qw = jax.nn.softmax(qfs, axis=-1)[:, :, None, :]                # (B, H, 1, S)
    ql = t4(mq)                                                     # (B, H, S, d)
    pooled_q = jnp.matmul(qw, ql)                                   # (B, H, 1, d)
    pooled_q = jnp.transpose(pooled_q, (0, 2, 1, 3)).reshape(B, 1, D)
    mqk = mk * pooled_q
    qks = jnp.transpose(mqk @ wka + bka, (0, 2, 1)) / (d ** 0.5)
    qks = qks + attention_mask
    qkw = jax.nn.softmax(qks, axis=-1)[:, :, None, :]
    kl = t4(mqk)
    pooled_k = jnp.matmul(qkw, kl)                                  # (B, H, 1, d)
    wv = jnp.transpose(pooled_k * ql, (0, 2, 1, 3)).reshape(B, S, D)
    return wv @ wt + bt + mq


def _init_params(key, D, H):
    ks = jax.random.split(key, 10)
    scale = 0.05
    return (
        scale * jax.random.normal(ks[0], (D, D), jnp.float32),   # Wq
        scale * jax.random.normal(ks[1], (D,), jnp.float32),     # bq
        scale * jax.random.normal(ks[2], (D, H), jnp.float32),   # Wqa
        scale * jax.random.normal(ks[3], (H,), jnp.float32),     # bqa
        scale * jax.random.normal(ks[4], (D, D), jnp.float32),   # Wk
        scale * jax.random.normal(ks[5], (D,), jnp.float32),     # bk
        scale * jax.random.normal(ks[6], (D, H), jnp.float32),   # Wka
        scale * jax.random.normal(ks[7], (H,), jnp.float32),     # bka
        scale * jax.random.normal(ks[8], (D, D), jnp.float32),   # Wt
        scale * jax.random.normal(ks[9], (D,), jnp.float32),     # bt
    )


if __name__ == "__main__":
    B, S, D, H = 2, 8, 32, 4   # small shapes: batch=2, seq=8, hidden=32, heads=4

    key = jax.random.PRNGKey(0)
    k_x, k_p = jax.random.split(key)
    hidden = jax.random.normal(k_x, (B, S, D), jnp.float32)

    # additive attention mask (B, 1, S): last two positions of batch 1 are masked out
    mask = jnp.zeros((B, 1, S), jnp.float32)
    mask = mask.at[1, 0, S - 2:].set(-1e9)

    params = _init_params(k_p, D, H)

    out = multi_head_fast_self_attention(hidden, mask, params, H)
    out = jax.block_until_ready(out)

    ref = _reference(hidden, mask, params, H)
    assert out.shape == (B, S, D)
    # bf16 MXU operands + approx reciprocal vs. the f32 reference: relaxed tolerance.
    assert jnp.allclose(out, ref, atol=2e-2, rtol=2e-2), float(jnp.max(jnp.abs(out - ref)))

    print("KERNEL_OK")
</pallas_src>

<mosaic_0001>
module attributes {stable_mosaic.version = 11 : i64} {
  func.func @_fast_attn_kernel(%arg0: i32, %arg1: memref<1x8x32xbf16, #tpu.memory_space<vmem>>, %arg2: memref<1x8x1xf32, #tpu.memory_space<vmem>>, %arg3: memref<32x32xbf16, #tpu.memory_space<vmem>>, %arg4: memref<1x32xf32, #tpu.memory_space<vmem>>, %arg5: memref<32x4xbf16, #tpu.memory_space<vmem>>, %arg6: memref<1x4xf32, #tpu.memory_space<vmem>>, %arg7: memref<32x32xbf16, #tpu.memory_space<vmem>>, %arg8: memref<1x32xf32, #tpu.memory_space<vmem>>, %arg9: memref<32x4xbf16, #tpu.memory_space<vmem>>, %arg10: memref<1x4xf32, #tpu.memory_space<vmem>>, %arg11: memref<32x32xbf16, #tpu.memory_space<vmem>>, %arg12: memref<1x32xf32, #tpu.memory_space<vmem>>, %arg13: memref<4x32xf32, #tpu.memory_space<vmem>>, %arg14: memref<1x8x32xf32, #tpu.memory_space<vmem>>) attributes {dimension_semantics = [#tpu.dimension_semantics<parallel>], iteration_bounds = array<i64: 2>, scalar_prefetch = 0 : i64, scratch_operands = 0 : i64, tpu.core_type = #tpu.core_type<tc>, window_params = [{transform_indices = @transform_0, window_bounds = array<i64: 1, 8, 32>}, {transform_indices = @transform_1, window_bounds = array<i64: 1, 8, 1>}, {pipeline_mode = #tpu.pipeline_mode<synchronous>, transform_indices = @transform_2, window_bounds = array<i64: 32, 32>}, {pipeline_mode = #tpu.pipeline_mode<synchronous>, transform_indices = @transform_3, window_bounds = array<i64: 1, 32>}, {pipeline_mode = #tpu.pipeline_mode<synchronous>, transform_indices = @transform_4, window_bounds = array<i64: 32, 4>}, {pipeline_mode = #tpu.pipeline_mode<synchronous>, transform_indices = @transform_5, window_bounds = array<i64: 1, 4>}, {pipeline_mode = #tpu.pipeline_mode<synchronous>, transform_indices = @transform_6, window_bounds = array<i64: 32, 32>}, {pipeline_mode = #tpu.pipeline_mode<synchronous>, transform_indices = @transform_7, window_bounds = array<i64: 1, 32>}, {pipeline_mode = #tpu.pipeline_mode<synchronous>, transform_indices = @transform_8, window_bounds = array<i64: 32, 4>}, {pipeline_mode = #tpu.pipeline_mode<synchronous>, transform_indices = @transform_9, window_bounds = array<i64: 1, 4>}, {pipeline_mode = #tpu.pipeline_mode<synchronous>, transform_indices = @transform_10, window_bounds = array<i64: 32, 32>}, {pipeline_mode = #tpu.pipeline_mode<synchronous>, transform_indices = @transform_11, window_bounds = array<i64: 1, 32>}, {pipeline_mode = #tpu.pipeline_mode<synchronous>, transform_indices = @transform_12, window_bounds = array<i64: 4, 32>}, {transform_indices = @transform_13, window_bounds = array<i64: 1, 8, 32>}]} {
    %c0 = arith.constant 0 : index
    %c0_0 = arith.constant 0 : index
    %c0_1 = arith.constant 0 : index
    %0 = vector.load %arg1[%c0, %c0_0, %c0_1] : memref<1x8x32xbf16, #tpu.memory_space<vmem>>, vector<1x8x32xbf16>
    %1 = vector.shape_cast %0 : vector<1x8x32xbf16> to vector<8x32xbf16>
    %c0_2 = arith.constant 0 : index
    %c0_3 = arith.constant 0 : index
    %c0_4 = arith.constant 0 : index
    %2 = vector.load %arg2[%c0_2, %c0_3, %c0_4] : memref<1x8x1xf32, #tpu.memory_space<vmem>>, vector<1x8x1xf32>
    %3 = vector.shape_cast %2 : vector<1x8x1xf32> to vector<8x1xf32>
    %c0_5 = arith.constant 0 : index
    %c0_6 = arith.constant 0 : index
    %4 = vector.load %arg13[%c0_5, %c0_6] : memref<4x32xf32, #tpu.memory_space<vmem>>, vector<4x32xf32>
    %c0_7 = arith.constant 0 : index
    %c0_8 = arith.constant 0 : index
    %5 = vector.load %arg3[%c0_7, %c0_8] : memref<32x32xbf16, #tpu.memory_space<vmem>>, vector<32x32xbf16>
    %cst = arith.constant dense<0.000000e+00> : vector<8x32xf32>
    %6 = tpu.matmul %1, %5, %cst {dimension_numbers = #tpu.dot_dimension_numbers<[1], [0], [0], [1], [0, 0, 1, 1], [], []>} : vector<8x32xbf16>, vector<32x32xbf16>, vector<8x32xf32> -> vector<8x32xf32>
    %c0_9 = arith.constant 0 : index
    %c0_10 = arith.constant 0 : index
    %7 = vector.load %arg4[%c0_9, %c0_10] : memref<1x32xf32, #tpu.memory_space<vmem>>, vector<1x32xf32>
    %8 = vector.broadcast %7 : vector<1x32xf32> to vector<8x32xf32>
    %9 = arith.addf %6, %8 : vector<8x32xf32>
    %c0_11 = arith.constant 0 : index
    %c0_12 = arith.constant 0 : index
    %10 = vector.load %arg7[%c0_11, %c0_12] : memref<32x32xbf16, #tpu.memory_space<vmem>>, vector<32x32xbf16>
    %cst_13 = arith.constant dense<0.000000e+00> : vector<8x32xf32>
    %11 = tpu.matmul %1, %10, %cst_13 {dimension_numbers = #tpu.dot_dimension_numbers<[1], [0], [0], [1], [0, 0, 1, 1], [], []>} : vector<8x32xbf16>, vector<32x32xbf16>, vector<8x32xf32> -> vector<8x32xf32>
    %c0_14 = arith.constant 0 : index
    %c0_15 = arith.constant 0 : index
    %12 = vector.load %arg8[%c0_14, %c0_15] : memref<1x32xf32, #tpu.memory_space<vmem>>, vector<1x32xf32>
    %13 = vector.broadcast %12 : vector<1x32xf32> to vector<8x32xf32>
    %14 = arith.addf %11, %13 : vector<8x32xf32>
    %c0_16 = arith.constant 0 : index
    %c0_17 = arith.constant 0 : index
    %15 = vector.load %arg5[%c0_16, %c0_17] : memref<32x4xbf16, #tpu.memory_space<vmem>>, vector<32x4xbf16>
    %cst_18 = arith.constant dense<0.000000e+00> : vector<8x4xf32>
    %16 = tpu.matmul %1, %15, %cst_18 {dimension_numbers = #tpu.dot_dimension_numbers<[1], [0], [0], [1], [0, 0, 1, 1], [], []>} : vector<8x32xbf16>, vector<32x4xbf16>, vector<8x4xf32> -> vector<8x4xf32>
    %c0_19 = arith.constant 0 : index
    %c0_20 = arith.constant 0 : index
    %17 = vector.load %arg6[%c0_19, %c0_20] : memref<1x4xf32, #tpu.memory_space<vmem>>, vector<1x4xf32>
    %18 = vector.broadcast %17 : vector<1x4xf32> to vector<8x4xf32>
    %19 = arith.addf %16, %18 : vector<8x4xf32>
    %20 = vector.broadcast %3 : vector<8x1xf32> to vector<8x4xf32>
    %21 = arith.addf %19, %20 : vector<8x4xf32>
    %cst_21 = arith.constant dense<0xFF800000> : vector<4xf32>
    %22 = vector.multi_reduction <maximumf>, %21, %cst_21 [0] : vector<8x4xf32> to vector<4xf32>
    %23 = vector.shape_cast %22 : vector<4xf32> to vector<1x4xf32>
    %24 = vector.broadcast %23 : vector<1x4xf32> to vector<8x4xf32>
    %25 = arith.subf %21, %24 : vector<8x4xf32>
    %26 = math.exp %25 : vector<8x4xf32>
    %cst_22 = arith.constant dense<0.000000e+00> : vector<4xf32>
    %27 = vector.multi_reduction <add>, %26, %cst_22 [0] : vector<8x4xf32> to vector<4xf32>
    %28 = vector.shape_cast %27 : vector<4xf32> to vector<1x4xf32>
    %29 = tpu.reciprocal %28 {approx = true} : vector<1x4xf32> -> vector<1x4xf32>
    %cst_23 = arith.constant dense<0.000000e+00> : vector<4x32xf32>
    %30 = tpu.matmul %26, %9, %cst_23 {dimension_numbers = #tpu.dot_dimension_numbers<[0], [0], [1], [1], [0, 1, 1, 1], [], []>} : vector<8x4xf32>, vector<8x32xf32>, vector<4x32xf32> -> vector<4x32xf32>
    %31 = arith.mulf %4, %30 : vector<4x32xf32>
    %cst_24 = arith.constant dense<0.000000e+00> : vector<32xf32>
    %32 = vector.multi_reduction <add>, %31, %cst_24 [0] : vector<4x32xf32> to vector<32xf32>
    %33 = vector.shape_cast %32 : vector<32xf32> to vector<1x32xf32>
    %cst_25 = arith.constant dense<0.000000e+00> : vector<1x32xf32>
    %34 = tpu.matmul %29, %4, %cst_25 {dimension_numbers = #tpu.dot_dimension_numbers<[1], [0], [0], [1], [0, 0, 1, 1], [], []>} : vector<1x4xf32>, vector<4x32xf32>, vector<1x32xf32> -> vector<1x32xf32>
    %35 = arith.mulf %33, %34 : vector<1x32xf32>
    %36 = vector.broadcast %35 : vector<1x32xf32> to vector<8x32xf32>
    %37 = arith.mulf %14, %36 : vector<8x32xf32>
    %38 = arith.truncf %37 : vector<8x32xf32> to vector<8x32xbf16>
    %c0_26 = arith.constant 0 : index
    %c0_27 = arith.constant 0 : index
    %39 = vector.load %arg9[%c0_26, %c0_27] : memref<32x4xbf16, #tpu.memory_space<vmem>>, vector<32x4xbf16>
    %cst_28 = arith.constant dense<0.000000e+00> : vector<8x4xf32>
    %40 = tpu.matmul %38, %39, %cst_28 {dimension_numbers = #tpu.dot_dimension_numbers<[1], [0], [0], [1], [0, 0, 1, 1], [], []>} : vector<8x32xbf16>, vector<32x4xbf16>, vector<8x4xf32> -> vector<8x4xf32>
    %c0_29 = arith.constant 0 : index
    %c0_30 = arith.constant 0 : index
    %41 = vector.load %arg10[%c0_29, %c0_30] : memref<1x4xf32, #tpu.memory_space<vmem>>, vector<1x4xf32>
    %42 = vector.broadcast %41 : vector<1x4xf32> to vector<8x4xf32>
    %43 = arith.addf %40, %42 : vector<8x4xf32>
    %44 = vector.broadcast %3 : vector<8x1xf32> to vector<8x4xf32>
    %45 = arith.addf %43, %44 : vector<8x4xf32>
    %cst_31 = arith.constant dense<0xFF800000> : vector<4xf32>
    %46 = vector.multi_reduction <maximumf>, %45, %cst_31 [0] : vector<8x4xf32> to vector<4xf32>
    %47 = vector.shape_cast %46 : vector<4xf32> to vector<1x4xf32>
    %48 = vector.broadcast %47 : vector<1x4xf32> to vector<8x4xf32>
    %49 = arith.subf %45, %48 : vector<8x4xf32>
    %50 = math.exp %49 : vector<8x4xf32>
    %cst_32 = arith.constant dense<0.000000e+00> : vector<4xf32>
    %51 = vector.multi_reduction <add>, %50, %cst_32 [0] : vector<8x4xf32> to vector<4xf32>
    %52 = vector.shape_cast %51 : vector<4xf32> to vector<1x4xf32>
    %53 = tpu.reciprocal %52 {approx = true} : vector<1x4xf32> -> vector<1x4xf32>
    %cst_33 = arith.constant dense<0.000000e+00> : vector<4x32xf32>
    %54 = tpu.matmul %50, %37, %cst_33 {dimension_numbers = #tpu.dot_dimension_numbers<[0], [0], [1], [1], [0, 1, 1, 1], [], []>} : vector<8x4xf32>, vector<8x32xf32>, vector<4x32xf32> -> vector<4x32xf32>
    %55 = arith.mulf %4, %54 : vector<4x32xf32>
    %cst_34 = arith.constant dense<0.000000e+00> : vector<32xf32>
    %56 = vector.multi_reduction <add>, %55, %cst_34 [0] : vector<4x32xf32> to vector<32xf32>
    %57 = vector.shape_cast %56 : vector<32xf32> to vector<1x32xf32>
    %cst_35 = arith.constant dense<0.000000e+00> : vector<1x32xf32>
    %58 = tpu.matmul %53, %4, %cst_35 {dimension_numbers = #tpu.dot_dimension_numbers<[1], [0], [0], [1], [0, 0, 1, 1], [], []>} : vector<1x4xf32>, vector<4x32xf32>, vector<1x32xf32> -> vector<1x32xf32>
    %59 = arith.mulf %57, %58 : vector<1x32xf32>
    %60 = vector.broadcast %59 : vector<1x32xf32> to vector<8x32xf32>
    %61 = arith.mulf %9, %60 : vector<8x32xf32>
    %62 = arith.truncf %61 : vector<8x32xf32> to vector<8x32xbf16>
    %c0_36 = arith.constant 0 : index
    %c0_37 = arith.constant 0 : index
    %63 = vector.load %arg11[%c0_36, %c0_37] : memref<32x32xbf16, #tpu.memory_space<vmem>>, vector<32x32xbf16>
    %cst_38 = arith.constant dense<0.000000e+00> : vector<8x32xf32>
    %64 = tpu.matmul %62, %63, %cst_38 {dimension_numbers = #tpu.dot_dimension_numbers<[1], [0], [0], [1], [0, 0, 1, 1], [], []>} : vector<8x32xbf16>, vector<32x32xbf16>, vector<8x32xf32> -> vector<8x32xf32>
    %c0_39 = arith.constant 0 : index
    %c0_40 = arith.constant 0 : index
    %65 = vector.load %arg12[%c0_39, %c0_40] : memref<1x32xf32, #tpu.memory_space<vmem>>, vector<1x32xf32>
    %66 = vector.broadcast %65 : vector<1x32xf32> to vector<8x32xf32>
    %67 = arith.addf %64, %66 : vector<8x32xf32>
    %68 = arith.addf %67, %9 : vector<8x32xf32>
    %c0_41 = arith.constant 0 : index
    %c0_42 = arith.constant 0 : index
    %c0_43 = arith.constant 0 : index
    %69 = vector.load %arg14[%c0_41, %c0_42, %c0_43] : memref<1x8x32xf32, #tpu.memory_space<vmem>>, vector<1x8x32xf32>
    %70 = vector.shape_cast %69 : vector<1x8x32xf32> to vector<8x32xf32>
    %71 = vector.shape_cast %68 : vector<8x32xf32> to vector<1x8x32xf32>
    tpu.vector_store %arg14[%c0_41, %c0_42, %c0_43], %71 {strides = array<i32>} : memref<1x8x32xf32, #tpu.memory_space<vmem>>, vector<1x8x32xf32>,
    return
  }
  func.func @transform_0(%arg0: i32) -> (i32, i32, i32) {
    %c0_i32 = arith.constant 0 : i32
    %c0_i32_0 = arith.constant 0 : i32
    %c0_i32_1 = arith.constant 0 : i32
    return %arg0, %c0_i32, %c0_i32_0 : i32, i32, i32
  }
  func.func @transform_1(%arg0: i32) -> (i32, i32, i32) {
    %c0_i32 = arith.constant 0 : i32
    %c0_i32_0 = arith.constant 0 : i32
    %c0_i32_1 = arith.constant 0 : i32
    return %arg0, %c0_i32, %c0_i32_0 : i32, i32, i32
  }
  func.func @transform_2(%arg0: i32) -> (i32, i32) {
    %c0_i32 = arith.constant 0 : i32
    %c0_i32_0 = arith.constant 0 : i32
    %c0_i32_1 = arith.constant 0 : i32
    return %c0_i32, %c0_i32_0 : i32, i32
  }
  func.func @transform_3(%arg0: i32) -> (i32, i32) {
    %c0_i32 = arith.constant 0 : i32
    %c0_i32_0 = arith.constant 0 : i32
    %c0_i32_1 = arith.constant 0 : i32
    return %c0_i32, %c0_i32_0 : i32, i32
  }
  func.func @transform_4(%arg0: i32) -> (i32, i32) {
    %c0_i32 = arith.constant 0 : i32
    %c0_i32_0 = arith.constant 0 : i32
    %c0_i32_1 = arith.constant 0 : i32
    return %c0_i32, %c0_i32_0 : i32, i32
  }
  func.func @transform_5(%arg0: i32) -> (i32, i32) {
    %c0_i32 = arith.constant 0 : i32
    %c0_i32_0 = arith.constant 0 : i32
    %c0_i32_1 = arith.constant 0 : i32
    return %c0_i32, %c0_i32_0 : i32, i32
  }
  func.func @transform_6(%arg0: i32) -> (i32, i32) {
    %c0_i32 = arith.constant 0 : i32
    %c0_i32_0 = arith.constant 0 : i32
    %c0_i32_1 = arith.constant 0 : i32
    return %c0_i32, %c0_i32_0 : i32, i32
  }
  func.func @transform_7(%arg0: i32) -> (i32, i32) {
    %c0_i32 = arith.constant 0 : i32
    %c0_i32_0 = arith.constant 0 : i32
    %c0_i32_1 = arith.constant 0 : i32
    return %c0_i32, %c0_i32_0 : i32, i32
  }
  func.func @transform_8(%arg0: i32) -> (i32, i32) {
    %c0_i32 = arith.constant 0 : i32
    %c0_i32_0 = arith.constant 0 : i32
    %c0_i32_1 = arith.constant 0 : i32
    return %c0_i32, %c0_i32_0 : i32, i32
  }
  func.func @transform_9(%arg0: i32) -> (i32, i32) {
    %c0_i32 = arith.constant 0 : i32
    %c0_i32_0 = arith.constant 0 : i32
    %c0_i32_1 = arith.constant 0 : i32
    return %c0_i32, %c0_i32_0 : i32, i32
  }
  func.func @transform_10(%arg0: i32) -> (i32, i32) {
    %c0_i32 = arith.constant 0 : i32
    %c0_i32_0 = arith.constant 0 : i32
    %c0_i32_1 = arith.constant 0 : i32
    return %c0_i32, %c0_i32_0 : i32, i32
  }
  func.func @transform_11(%arg0: i32) -> (i32, i32) {
    %c0_i32 = arith.constant 0 : i32
    %c0_i32_0 = arith.constant 0 : i32
    %c0_i32_1 = arith.constant 0 : i32
    return %c0_i32, %c0_i32_0 : i32, i32
  }
  func.func @transform_12(%arg0: i32) -> (i32, i32) {
    %c0_i32 = arith.constant 0 : i32
    %c0_i32_0 = arith.constant 0 : i32
    %c0_i32_1 = arith.constant 0 : i32
    return %c0_i32, %c0_i32_0 : i32, i32
  }
  func.func @transform_13(%arg0: i32) -> (i32, i32, i32) {
    %c0_i32 = arith.constant 0 : i32
    %c0_i32_0 = arith.constant 0 : i32
    %c0_i32_1 = arith.constant 0 : i32
    return %arg0, %c0_i32, %c0_i32_0 : i32, i32, i32
  }
}

</mosaic_0001>

<llo_original>
// kernel: tpu_custom_call.1
$region0: #{tpu_custom_call.1}
  #allocation0 [shape = 'u32[]', space=smem, size = 0x4, offset = 0x4, fixed_abs, tag = 'smem constant byte address 0x4 - core index']
  #allocation1 [shape = 'u32[144,128]{1,0:T(1,128)}', space=vmem, size = 0x12000, scoped, tag = 'internal scratch']
  %s0 = inlined_call_operand.hbm [shape: bf16[2,8,32], index: 0, kind: input, shape index: {}]
  %s1 = inlined_call_operand.vmem [shape: f32[2,8,1], index: 1, kind: input, shape index: {}]
  %s2 = inlined_call_operand.vmem [shape: bf16[32,32], index: 2, kind: input, shape index: {}]
  %s3 = inlined_call_operand.vmem [shape: f32[1,32], index: 3, kind: input, shape index: {}]
  %s4 = inlined_call_operand.vmem [shape: bf16[32,4], index: 4, kind: input, shape index: {}]
  %s5 = inlined_call_operand.vmem [shape: f32[1,4], index: 5, kind: input, shape index: {}]
  %s6 = inlined_call_operand.vmem [shape: bf16[32,32], index: 6, kind: input, shape index: {}]
  %s7 = inlined_call_operand.vmem [shape: f32[1,32], index: 7, kind: input, shape index: {}]
  %s8 = inlined_call_operand.vmem [shape: bf16[32,4], index: 8, kind: input, shape index: {}]
  %s9 = inlined_call_operand.vmem [shape: f32[1,4], index: 9, kind: input, shape index: {}]
  %s10 = inlined_call_operand.vmem [shape: bf16[32,32], index: 10, kind: input, shape index: {}]
  %s11 = inlined_call_operand.vmem [shape: f32[1,32], index: 11, kind: input, shape index: {}]
  %s12 = inlined_call_operand.vmem [shape: f32[4,32], index: 12, kind: input, shape index: {}]
  %s13 = inlined_call_operand.hbm [shape: f32[2,8,32], index: 13, kind: output, shape index: {}]
  %s14 = sld [smem:[#allocation0]]
  $region89: #{tpu_custom_call.1} parent=0
    _
  %s16 = ssub.s32 1, %s14
  %s17 = scalar_select 0, %s16, %s14
  $region1: #{tpu_custom_call.1} parent=0
    #allocation2 [shape = 'u8[4096]{0}', space=vmem, size = 0x1000, scoped, tag = 'input window, operand 0']
    #allocation3 [shape = 's32[2]{0}', space=sflag, size = 0x8, scoped, tag = 'scoped memory for tpu_custom_call.1']
    #allocation4 [shape = 's32[2]{0}', space=sflag, size = 0x8, scoped, tag = 'scoped memory for tpu_custom_call.1']
    #allocation5 [shape = 'u8[8192]{0}', space=vmem, size = 0x2000, scoped, tag = 'output window, operand 0']
    %18 = vsyncpa [#allocation3], 0
    %s19 = scalar_lea.sflag [#allocation3], 1
    %20 = vsyncpa %s19, 0
    %21 = vsyncpa [#allocation4], 0
    %s22 = scalar_lea.sflag [#allocation4], 1
    %23 = vsyncpa %s22, 0
    loop: start=0, step=1, limit=4
    $region2: #{tpu_custom_call.1} parent=1 // loop_pre_header
      _
    $region3: #{tpu_custom_call.1} parent=1 // loop_header
      %s25 = sphi 0, %s29
      %p26 = scmp.ge.s32.totalorder %s25, 4
      %s35 = sphi 0, %s37
      %s38 = sphi 0, %s35
      %s39 = sphi 0, %s38
      %s55 = sphi 0, %s39
      %s61 = sphi 0, %s63
      %s64 = sphi 0, %s61
      %s65 = sphi 0, %s64
      %s81 = sphi 0, %s65
      %s85 = sphi 0, %s85
      %s87 = sphi 0, %s85
      %s88 = sphi 0, %s87
      %s102 = sphi 0, %s88
      %s106 = sphi 0, %s106
      %s108 = sphi 0, %s106
      %s109 = sphi 0, %s108
      %s123 = sphi 0, %s109
      %s127 = sphi 0, %s127
      %s129 = sphi 0, %s127
      %s130 = sphi 0, %s129
      %s144 = sphi 0, %s130
      %s148 = sphi 0, %s148
      %s150 = sphi 0, %s148
      %s151 = sphi 0, %s150
      %s165 = sphi 0, %s151
      %s169 = sphi 0, %s169
      %s171 = sphi 0, %s169
      %s172 = sphi 0, %s171
      %s186 = sphi 0, %s172
      %s190 = sphi 0, %s190
      %s192 = sphi 0, %s190
      %s193 = sphi 0, %s192
      %s207 = sphi 0, %s193
      %s211 = sphi 0, %s211
      %s213 = sphi 0, %s211
      %s214 = sphi 0, %s213
      %s228 = sphi 0, %s214
      %s232 = sphi 0, %s232
      %s234 = sphi 0, %s232
      %s235 = sphi 0, %s234
      %s249 = sphi 0, %s235
      %s253 = sphi 0, %s253
      %s255 = sphi 0, %s253
      %s256 = sphi 0, %s255
      %s270 = sphi 0, %s256
      %s274 = sphi 0, %s274
      %s276 = sphi 0, %s274
      %s277 = sphi 0, %s276
      %s291 = sphi 0, %s277
      %s295 = sphi 0, %s295
      %s297 = sphi 0, %s295
      %s298 = sphi 0, %s297
      %s312 = sphi 0, %s298
      %s318 = sphi 0, %s320
      %s321 = sphi 0, %s318
      %s322 = sphi 0, %s321
      %s338 = sphi 0, %s322
    $region4: #{tpu_custom_call.1} parent=1 // loop_header_branch
      %28 = sbr.rel (%p26) target = $region8
    $region5: #{tpu_custom_call.1} parent=1 // loop_body
      %s30 = ssub.s32 %s25, 1
      %s31 = ssub.s32 %s25, 2
      %s32 = sadd.s32 %s25, 1
      %s33 = ssub.s32 %s25, %s32
      %p34 = scmp.eq.s32.totalorder %s33, 0
      %s36 = sadd.s32 %s35, 1
      %s37 = scalar_select %p34, %s35, %s36
      %p40 = pneg %p34
      %p41 = scmp.eq.s32.totalorder %s25, 1
      %p42 = por %p40, %p41
      %p43 = scmp.ne.s32.totalorder %s35, %s38
      %p44 = scmp.eq.s32.totalorder %s25, 0
      %p45 = por %p43, %p44
      %p46 = scmp.ne.s32.totalorder %s35, %s38
      %p47 = scmp.eq.s32.totalorder %s30, 1
      %p48 = por %p46, %p47
      %p49 = scmp.ne.s32.totalorder %s38, %s39
      %p50 = scmp.eq.s32.totalorder %s30, 0
      %p51 = por %p49, %p50
      %p52 = scmp.ne.s32.totalorder %s38, %s39
      %p53 = scmp.eq.s32.totalorder %s31, 1
      %p54 = por %p52, %p53
      %p56 = scmp.ne.s32.totalorder %s39, %s55
      %p57 = scmp.eq.s32.totalorder %s31, 0
      %p58 = por %p56, %p57
      %s59 = ssub.s32 %s25, %s32
      %p60 = scmp.eq.s32.totalorder %s59, 0
      %s62 = sadd.s32 %s61, 1
      %s63 = scalar_select %p60, %s61, %s62
      %p66 = pneg %p60
      %p67 = scmp.eq.s32.totalorder %s25, 1
      %p68 = por %p66, %p67
      %p69 = scmp.ne.s32.totalorder %s61, %s64
      %p70 = scmp.eq.s32.totalorder %s25, 0
      %p71 = por %p69, %p70
      %p72 = scmp.ne.s32.totalorder %s61, %s64
      %p73 = scmp.eq.s32.totalorder %s30, 1
      %p74 = por %p72, %p73
      %p75 = scmp.ne.s32.totalorder %s64, %s65
      %p76 = scmp.eq.s32.totalorder %s30, 0
      %p77 = por %p75, %p76
      %p78 = scmp.ne.s32.totalorder %s64, %s65
      %p79 = scmp.eq.s32.totalorder %s31, 1
      %p80 = por %p78, %p79
      %p82 = scmp.ne.s32.totalorder %s65, %s81
      %p83 = scmp.eq.s32.totalorder %s31, 0
      %p84 = por %p82, %p83
      %s86 = sadd.s32 %s85, 1
      %p89 = scmp.eq.s32.totalorder %s25, 1
      %p90 = scmp.ne.s32.totalorder %s85, %s87
      %p91 = scmp.eq.s32.totalorder %s25, 0
      %p92 = por %p90, %p91
      %p93 = scmp.ne.s32.totalorder %s85, %s87
      %p94 = scmp.eq.s32.totalorder %s30, 1
      %p95 = por %p93, %p94
      %p96 = scmp.ne.s32.totalorder %s87, %s88
      %p97 = scmp.eq.s32.totalorder %s30, 0
      %p98 = por %p96, %p97
      %p99 = scmp.ne.s32.totalorder %s87, %s88
      %p100 = scmp.eq.s32.totalorder %s31, 1
      %p101 = por %p99, %p100
      %p103 = scmp.ne.s32.totalorder %s88, %s102
      %p104 = scmp.eq.s32.totalorder %s31, 0
      %p105 = por %p103, %p104
      %s107 = sadd.s32 %s106, 1
      %p110 = scmp.eq.s32.totalorder %s25, 1
      %p111 = scmp.ne.s32.totalorder %s106, %s108
      %p112 = scmp.eq.s32.totalorder %s25, 0
      %p113 = por %p111, %p112
      %p114 = scmp.ne.s32.totalorder %s106, %s108
      %p115 = scmp.eq.s32.totalorder %s30, 1
      %p116 = por %p114, %p115
      %p117 = scmp.ne.s32.totalorder %s108, %s109
      %p118 = scmp.eq.s32.totalorder %s30, 0
      %p119 = por %p117, %p118
      %p120 = scmp.ne.s32.totalorder %s108, %s109
      %p121 = scmp.eq.s32.totalorder %s31, 1
      %p122 = por %p120, %p121
      %p124 = scmp.ne.s32.totalorder %s109, %s123
      %p125 = scmp.eq.s32.totalorder %s31, 0
      %p126 = por %p124, %p125
      %s128 = sadd.s32 %s127, 1
      %p131 = scmp.eq.s32.totalorder %s25, 1
      %p132 = scmp.ne.s32.totalorder %s127, %s129
      %p133 = scmp.eq.s32.totalorder %s25, 0
      %p134 = por %p132, %p133
      %p135 = scmp.ne.s32.totalorder %s127, %s129
      %p136 = scmp.eq.s32.totalorder %s30, 1
      %p137 = por %p135, %p136
      %p138 = scmp.ne.s32.totalorder %s129, %s130
      %p139 = scmp.eq.s32.totalorder %s30, 0
      %p140 = por %p138, %p139
      %p141 = scmp.ne.s32.totalorder %s129, %s130
      %p142 = scmp.eq.s32.totalorder %s31, 1
      %p143 = por %p141, %p142
      %p145 = scmp.ne.s32.totalorder %s130, %s144
      %p146 = scmp.eq.s32.totalorder %s31, 0
      %p147 = por %p145, %p146
      %s149 = sadd.s32 %s148, 1
      %p152 = scmp.eq.s32.totalorder %s25, 1
      %p153 = scmp.ne.s32.totalorder %s148, %s150
      %p154 = scmp.eq.s32.totalorder %s25, 0
      %p155 = por %p153, %p154
      %p156 = scmp.ne.s32.totalorder %s148, %s150
      %p157 = scmp.eq.s32.totalorder %s30, 1
      %p158 = por %p156, %p157
      %p159 = scmp.ne.s32.totalorder %s150, %s151
      %p160 = scmp.eq.s32.totalorder %s30, 0
      %p161 = por %p159, %p160
      %p162 = scmp.ne.s32.totalorder %s150, %s151
      %p163 = scmp.eq.s32.totalorder %s31, 1
      %p164 = por %p162, %p163
      %p166 = scmp.ne.s32.totalorder %s151, %s165
      %p167 = scmp.eq.s32.totalorder %s31, 0
      %p168 = por %p166, %p167
      %s170 = sadd.s32 %s169, 1
      %p173 = scmp.eq.s32.totalorder %s25, 1
      %p174 = scmp.ne.s32.totalorder %s169, %s171
      %p175 = scmp.eq.s32.totalorder %s25, 0
      %p176 = por %p174, %p175
      %p177 = scmp.ne.s32.totalorder %s169, %s171
      %p178 = scmp.eq.s32.totalorder %s30, 1
      %p179 = por %p177, %p178
      %p180 = scmp.ne.s32.totalorder %s171, %s172
      %p181 = scmp.eq.s32.totalorder %s30, 0
      %p182 = por %p180, %p181
      %p183 = scmp.ne.s32.totalorder %s171, %s172
      %p184 = scmp.eq.s32.totalorder %s31, 1
      %p185 = por %p183, %p184
      %p187 = scmp.ne.s32.totalorder %s172, %s186
      %p188 = scmp.eq.s32.totalorder %s31, 0
      %p189 = por %p187, %p188
      %s191 = sadd.s32 %s190, 1
      %p194 = scmp.eq.s32.totalorder %s25, 1
      %p195 = scmp.ne.s32.totalorder %s190, %s192
      %p196 = scmp.eq.s32.totalorder %s25, 0
      %p197 = por %p195, %p196
      %p198 = scmp.ne.s32.totalorder %s190, %s192
      %p199 = scmp.eq.s32.totalorder %s30, 1
      %p200 = por %p198, %p199
      %p201 = scmp.ne.s32.totalorder %s192, %s193
      %p202 = scmp.eq.s32.totalorder %s30, 0
      %p203 = por %p201, %p202
      %p204 = scmp.ne.s32.totalorder %s192, %s193
      %p205 = scmp.eq.s32.totalorder %s31, 1
      %p206 = por %p204, %p205
      %p208 = scmp.ne.s32.totalorder %s193, %s207
      %p209 = scmp.eq.s32.totalorder %s31, 0
      %p210 = por %p208, %p209
      %s212 = sadd.s32 %s211, 1
      %p215 = scmp.eq.s32.totalorder %s25, 1
      %p216 = scmp.ne.s32.totalorder %s211, %s213
      %p217 = scmp.eq.s32.totalorder %s25, 0
      %p218 = por %p216, %p217
      %p219 = scmp.ne.s32.totalorder %s211, %s213
      %p220 = scmp.eq.s32.totalorder %s30, 1
      %p221 = por %p219, %p220
      %p222 = scmp.ne.s32.totalorder %s213, %s214
      %p223 = scmp.eq.s32.totalorder %s30, 0
      %p224 = por %p222, %p223
      %p225 = scmp.ne.s32.totalorder %s213, %s214
      %p226 = scmp.eq.s32.totalorder %s31, 1
      %p227 = por %p225, %p226
      %p229 = scmp.ne.s32.totalorder %s214, %s228
      %p230 = scmp.eq.s32.totalorder %s31, 0
      %p231 = por %p229, %p230
      %s233 = sadd.s32 %s232, 1
      %p236 = scmp.eq.s32.totalorder %s25, 1
      %p237 = scmp.ne.s32.totalorder %s232, %s234
      %p238 = scmp.eq.s32.totalorder %s25, 0
      %p239 = por %p237, %p238
      %p240 = scmp.ne.s32.totalorder %s232, %s234
      %p241 = scmp.eq.s32.totalorder %s30, 1
      %p242 = por %p240, %p241
      %p243 = scmp.ne.s32.totalorder %s234, %s235
      %p244 = scmp.eq.s32.totalorder %s30, 0
      %p245 = por %p243, %p244
      %p246 = scmp.ne.s32.totalorder %s234, %s235
      %p247 = scmp.eq.s32.totalorder %s31, 1
      %p248 = por %p246, %p247
      %p250 = scmp.ne.s32.totalorder %s235, %s249
      %p251 = scmp.eq.s32.totalorder %s31, 0
      %p252 = por %p250, %p251
      %s254 = sadd.s32 %s253, 1
      %p257 = scmp.eq.s32.totalorder %s25, 1
      %p258 = scmp.ne.s32.totalorder %s253, %s255
      %p259 = scmp.eq.s32.totalorder %s25, 0
      %p260 = por %p258, %p259
      %p261 = scmp.ne.s32.totalorder %s253, %s255
      %p262 = scmp.eq.s32.totalorder %s30, 1
      %p263 = por %p261, %p262
      %p264 = scmp.ne.s32.totalorder %s255, %s256
      %p265 = scmp.eq.s32.totalorder %s30, 0
      %p266 = por %p264, %p265
      %p267 = scmp.ne.s32.totalorder %s255, %s256
      %p268 = scmp.eq.s32.totalorder %s31, 1
      %p269 = por %p267, %p268
      %p271 = scmp.ne.s32.totalorder %s256, %s270
      %p272 = scmp.eq.s32.totalorder %s31, 0
      %p273 = por %p271, %p272
      %s275 = sadd.s32 %s274, 1
      %p278 = scmp.eq.s32.totalorder %s25, 1
      %p279 = scmp.ne.s32.totalorder %s274, %s276
      %p280 = scmp.eq.s32.totalorder %s25, 0
      %p281 = por %p279, %p280
      %p282 = scmp.ne.s32.totalorder %s274, %s276
      %p283 = scmp.eq.s32.totalorder %s30, 1
      %p284 = por %p282, %p283
      %p285 = scmp.ne.s32.totalorder %s276, %s277
      %p286 = scmp.eq.s32.totalorder %s30, 0
      %p287 = por %p285, %p286
      %p288 = scmp.ne.s32.totalorder %s276, %s277
      %p289 = scmp.eq.s32.totalorder %s31, 1
      %p290 = por %p288, %p289
      %p292 = scmp.ne.s32.totalorder %s277, %s291
      %p293 = scmp.eq.s32.totalorder %s31, 0
      %p294 = por %p292, %p293
      %s296 = sadd.s32 %s295, 1
      %p299 = scmp.eq.s32.totalorder %s25, 1
      %p300 = scmp.ne.s32.totalorder %s295, %s297
      %p301 = scmp.eq.s32.totalorder %s25, 0
      %p302 = por %p300, %p301
      %p303 = scmp.ne.s32.totalorder %s295, %s297
      %p304 = scmp.eq.s32.totalorder %s30, 1
      %p305 = por %p303, %p304
      %p306 = scmp.ne.s32.totalorder %s297, %s298
      %p307 = scmp.eq.s32.totalorder %s30, 0
      %p308 = por %p306, %p307
      %p309 = scmp.ne.s32.totalorder %s297, %s298
      %p310 = scmp.eq.s32.totalorder %s31, 1
      %p311 = por %p309, %p310
      %p313 = scmp.ne.s32.totalorder %s298, %s312
      %p314 = scmp.eq.s32.totalorder %s31, 0
      %p315 = por %p313, %p314
      %s316 = ssub.s32 %s25, %s32
      %p317 = scmp.eq.s32.totalorder %s316, 0
      %s319 = sadd.s32 %s318, 1
      %s320 = scalar_select %p317, %s318, %s319
      %p323 = pneg %p317
      %p324 = scmp.eq.s32.totalorder %s25, 1
      %p325 = por %p323, %p324
      %p326 = scmp.ne.s32.totalorder %s318, %s321
      %p327 = scmp.eq.s32.totalorder %s25, 0
      %p328 = por %p326, %p327
      %p329 = scmp.ne.s32.totalorder %s318, %s321
      %p330 = scmp.eq.s32.totalorder %s30, 1
      %p331 = por %p329, %p330
      %p332 = scmp.ne.s32.totalorder %s321, %s322
      %p333 = scmp.eq.s32.totalorder %s30, 0
      %p334 = por %p332, %p333
      %p335 = scmp.ne.s32.totalorder %s321, %s322
      %p336 = scmp.eq.s32.totalorder %s31, 1
      %p337 = por %p335, %p336
      %p339 = scmp.ne.s32.totalorder %s322, %s338
      %p340 = scmp.eq.s32.totalorder %s31, 0
      %p341 = por %p339, %p340
      %p342 = scmp.le.s32.totalorder 1, %s25
      %p343 = scmp.lt.s32.totalorder %s25, 3
      %p344 = pnand %p342, %p343
      %p345 = pneg %p344
      // Predicated region
      $region9: #{tpu_custom_call.1} parent=5 // pred_check
        _
      $region10: #{tpu_custom_call.1} parent=5 // pred_check_branch
        %347 = sbr.rel (%p344) target = $region12
      $region11: #{tpu_custom_call.1} parent=5 // pred_region
        %s348 = ssub.s32 %s25, 1
        // Predicated region
        $region13: #{tpu_custom_call.1} parent=11 // pred_check
          %p349 = pneg %p98
        $region14: #{tpu_custom_call.1} parent=11 // pred_check_branch
          %351 = sbr.rel (%p349) target = $region16
        $region15: #{tpu_custom_call.1} parent=11 // pred_region
          _
        $region16: #{tpu_custom_call.1} parent=11 // pred_fallthru
          _
        // Predicated region
        $region17: #{tpu_custom_call.1} parent=11 // pred_check
          %p352 = pneg %p119
        $region18: #{tpu_custom_call.1} parent=11 // pred_check_branch
          %354 = sbr.rel (%p352) target = $region20
        $region19: #{tpu_custom_call.1} parent=11 // pred_region
          _
        $region20: #{tpu_custom_call.1} parent=11 // pred_fallthru
          _
        // Predicated region
        $region21: #{tpu_custom_call.1} parent=11 // pred_check
          %p355 = pneg %p140
        $region22: #{tpu_custom_call.1} parent=11 // pred_check_branch
          %357 = sbr.rel (%p355) target = $region24
        $region23: #{tpu_custom_call.1} parent=11 // pred_region
          _
        $region24: #{tpu_custom_call.1} parent=11 // pred_fallthru
          _
        // Predicated region
        $region25: #{tpu_custom_call.1} parent=11 // pred_check
          %p358 = pneg %p161
        $region26: #{tpu_custom_call.1} parent=11 // pred_check_branch
          %360 = sbr.rel (%p358) target = $region28
        $region27: #{tpu_custom_call.1} parent=11 // pred_region
          _
        $region28: #{tpu_custom_call.1} parent=11 // pred_fallthru
          _
        // Predicated region
        $region29: #{tpu_custom_call.1} parent=11 // pred_check
          %p361 = pneg %p182
        $region30: #{tpu_custom_call.1} parent=11 // pred_check_branch
          %363 = sbr.rel (%p361) target = $region32
        $region31: #{tpu_custom_call.1} parent=11 // pred_region
          _
        $region32: #{tpu_custom_call.1} parent=11 // pred_fallthru
          _
        // Predicated region
        $region33: #{tpu_custom_call.1} parent=11 // pred_check
          %p364 = pneg %p203
        $region34: #{tpu_custom_call.1} parent=11 // pred_check_branch
          %366 = sbr.rel (%p364) target = $region36
        $region35: #{tpu_custom_call.1} parent=11 // pred_region
          _
        $region36: #{tpu_custom_call.1} parent=11 // pred_fallthru
          _
        // Predicated region
        $region37: #{tpu_custom_call.1} parent=11 // pred_check
          %p367 = pneg %p224
        $region38: #{tpu_custom_call.1} parent=11 // pred_check_branch
          %369 = sbr.rel (%p367) target = $region40
        $region39: #{tpu_custom_call.1} parent=11 // pred_region
          _
        $region40: #{tpu_custom_call.1} parent=11 // pred_fallthru
          _
        // Predicated region
        $region41: #{tpu_custom_call.1} parent=11 // pred_check
          %p370 = pneg %p245
        $region42: #{tpu_custom_call.1} parent=11 // pred_check_branch
          %372 = sbr.rel (%p370) target = $region44
        $region43: #{tpu_custom_call.1} parent=11 // pred_region
          _
        $region44: #{tpu_custom_call.1} parent=11 // pred_fallthru
          _
        // Predicated region
        $region45: #{tpu_custom_call.1} parent=11 // pred_check
          %p373 = pneg %p266
        $region46: #{tpu_custom_call.1} parent=11 // pred_check_branch
          %375 = sbr.rel (%p373) target = $region48
        $region47: #{tpu_custom_call.1} parent=11 // pred_region
          _
        $region48: #{tpu_custom_call.1} parent=11 // pred_fallthru
          _
        // Predicated region
        $region49: #{tpu_custom_call.1} parent=11 // pred_check
          %p376 = pneg %p287
        $region50: #{tpu_custom_call.1} parent=11 // pred_check_branch
          %378 = sbr.rel (%p376) target = $region52
        $region51: #{tpu_custom_call.1} parent=11 // pred_region
          _
        $region52: #{tpu_custom_call.1} parent=11 // pred_fallthru
          _
        // Predicated region
        $region53: #{tpu_custom_call.1} parent=11 // pred_check
          %p379 = pneg %p308
        $region54: #{tpu_custom_call.1} parent=11 // pred_check_branch
          %381 = sbr.rel (%p379) target = $region56
        $region55: #{tpu_custom_call.1} parent=11 // pred_region
          _
        $region56: #{tpu_custom_call.1} parent=11 // pred_fallthru
          _
      $region12: #{tpu_custom_call.1} parent=5 // pred_fallthru
        _
      %p382 = scmp.lt.s32.totalorder %s25, 2
      // Predicated region
      $region57: #{tpu_custom_call.1} parent=5 // pred_check
        %p383 = pneg %p382
      $region58: #{tpu_custom_call.1} parent=5 // pred_check_branch
        %385 = sbr.rel (%p383) target = $region60
      $region59: #{tpu_custom_call.1} parent=5 // pred_region
        // Predicated region
        $region61: #{tpu_custom_call.1} parent=59 // pred_check
          %p386 = pneg %p45
        $region62: #{tpu_custom_call.1} parent=59 // pred_check_branch
          %388 = sbr.rel (%p386) target = $region64
        $region63: #{tpu_custom_call.1} parent=59 // pred_region
          %s389 = sand.u32 %s35, 1
          %s390 = scalar_lea.sflag [#allocation3], %s389
          %s391 = sand.u32 %s35, 1
          %s392 = smul.addr %s391, 4
          %s393 = scalar_lea.vmem [#allocation2], %s392
          %s395 = ssub.s32 64, 64
          %396 = vsyncadd %s390, %s395
          %s397 = smul.addr %s25, 64
          %s398 = scalar_lea.hbm %s0, %s397
          %s400 = sshll.u32 %s393, 4
          %s401 = int_to_ptr.vmem [resolvable:$true] %s400
          %403 = dma.hbm_to_vmem [thread:$0]  %s398, 64, %s401, %s390
        $region64: #{tpu_custom_call.1} parent=59 // pred_fallthru
          _
        // Predicated region
        $region65: #{tpu_custom_call.1} parent=59 // pred_check
          %p404 = pneg %p71
        $region66: #{tpu_custom_call.1} parent=59 // pred_check_branch
          %406 = sbr.rel (%p404) target = $region68
        $region67: #{tpu_custom_call.1} parent=59 // pred_region
          %p407 = scmp.lt.s32.totalorder %s25, 1
          %s408 = scalar_select %p407, %s25, 1
          %s409 = smul.addr %s408, 8
          %s410 = scalar_lea.vmem %s1, %s409
        $region68: #{tpu_custom_call.1} parent=59 // pred_fallthru
          _
      $region60: #{tpu_custom_call.1} parent=5 // pred_fallthru
        _
      %p411 = scmp.le.s32.totalorder 1, %s25
      %p412 = scmp.lt.s32.totalorder %s25, 3
      %p413 = pnand %p411, %p412
      %p414 = pneg %p413
      // Predicated region
      $region69: #{tpu_custom_call.1} parent=5 // pred_check
        _
      $region70: #{tpu_custom_call.1} parent=5 // pred_check_branch
        %416 = sbr.rel (%p413) target = $region72
      $region71: #{tpu_custom_call.1} parent=5 // pred_region
        %s417 = ssub.s32 %s25, 1
        %s418 = sand.u32 %s38, 1
        %s419 = scalar_lea.sflag [#allocation3], %s418
        %s420 = sand.u32 %s38, 1
        %s421 = smul.addr %s420, 4
        %s422 = scalar_lea.vmem [#allocation2], %s421
        // Predicated region
        $region73: #{tpu_custom_call.1} parent=71 // pred_check
          %p423 = pneg %p51
        $region74: #{tpu_custom_call.1} parent=71 // pred_check_branch
          %425 = sbr.rel (%p423) target = $region76
        $region75: #{tpu_custom_call.1} parent=71 // pred_region
          %426 = dma.done %s419, 64
        $region76: #{tpu_custom_call.1} parent=71 // pred_fallthru
          _
        %s427 = sand.u32 %s38, 1
        %s428 = scalar_lea.sflag [#allocation3], %s427
        %s429 = sand.u32 %s38, 1
        %s430 = smul.addr %s429, 4
        %s431 = scalar_lea.vmem [#allocation2], %s430
        %p432 = pneg %p51
        %p433 = pneg %p48
        %p434 = scmp.lt.s32.totalorder %s30, 1
        %s435 = scalar_select %p434, %s30, 1
        %s436 = smul.addr %s435, 8
        %s437 = scalar_lea.vmem %s1, %s436
        %p438 = pneg %p77
        %p439 = pneg %p74
        %p440 = pneg %p98
        %p441 = pneg %p95
        %p442 = pneg %p119
        %p443 = pneg %p116
        %p444 = pneg %p140
        %p445 = pneg %p137
        %p446 = pneg %p161
        %p447 = pneg %p158
        %p448 = pneg %p182
        %p449 = pneg %p179
        %p450 = pneg %p203
        %p451 = pneg %p200
        %p452 = pneg %p224
        %p453 = pneg %p221
        %p454 = pneg %p245
        %p455 = pneg %p242
        %p456 = pneg %p266
        %p457 = pneg %p263
        %p458 = pneg %p287
        %p459 = pneg %p284
        %p460 = pneg %p308
        %p461 = pneg %p305
        %p462 = pneg %p334
        %p463 = pneg %p331
        %s464 = sand.u32 %s321, 1
        %s465 = scalar_lea.sflag [#allocation4], %s464
        %s466 = sand.u32 %s321, 1
        %s467 = smul.addr %s466, 8
        %s468 = scalar_lea.vmem [#allocation5], %s467
        %p469 = scmp.lt.s32.totalorder %s30, 1
        %s470 = scalar_select %p469, %s30, 1
        %s471 = smul.addr %s470, 8
        %s472 = scalar_lea.vmem %s1, %s471
        %v474 = vld [vmem:[%s422] sm:$0xf]
        %v475 = vld [vmem:[%s472] sm:$0xff]
        %v476 = vld [vmem:[%s12] sm:$0xf]
        %v477 = vld [vmem:[%s2] sm:$0xf]
        %v478 = vld [vmem:[%s2 + $0x4] sm:$0xf]
        %v479 = vld [vmem:[%s2 + $0x8] sm:$0xf]
        %v480 = vld [vmem:[%s2 + $0xc] sm:$0xf]
        %v481 = vld [vmem:[%s3] sm:$0x1]
        %v483 = vlaneseq
        %v484 = vshrl.u32 %v483, 7
        %v485 = vsub.s32 0, %v484
        %v486 = vrot.slane %v481, %v485
        %v492 = vunpack.c.l.b16 %v477
        %v493 = vunpack.c.l.b16 %v478
        %v494 = vunpack.c.l.b16 %v479
        %v495 = vunpack.c.l.b16 %v480
        %v496 = vpack.c.b16 %v493, %v492
        %v497 = vpack.c.b16 %v495, %v494
        %vm500 = vcmask 261120
        %v502 = vsel %vm500, %v474, 0
        %504 = vmatprep.subr.bf16.mxu0 0
        %505 = vmatpush1.bf16.msra.mxu0 %v496
        %506 = vmatprep.subr.bf16.mxu0 0
        %507 = vmatpush1.bf16.msra.mxu0 %v497
        %508 = vmatprep.subr.bf16.mxu0 0
        %509 = vmatpush1.bf16.msra.mxu0 0
        %510 = vmatprep.subr.bf16.mxu0 0
        %511 = vmatpush1.bf16.msra.mxu0 0
        %512 = vmatprep.subr.bf16.mxu0 0
        %513 = vmatpush1.bf16.msra.mxu0 0
        %514 = vmatprep.subr.bf16.mxu0 0
        %515 = vmatpush1.bf16.msra.mxu0 0
        %516 = vmatprep.subr.bf16.mxu0 0
        %517 = vmatpush1.bf16.msra.mxu0 0
        %518 = vmatprep.subr.bf16.mxu0 0
        %519 = vmatpush1.bf16.msra.mxu0 0
        %520 = vmatprep.subr.bf16.mxu0 0
        %521 = vmatpush1.bf16.msra.mxu0 0
        %522 = vmatprep.subr.bf16.mxu0 0
        %523 = vmatpush1.bf16.msra.mxu0 0
        %524 = vmatprep.subr.bf16.mxu0 0
        %525 = vmatpush1.bf16.msra.mxu0 0
        %526 = vmatprep.subr.bf16.mxu0 0
        %527 = vmatpush1.bf16.msra.mxu0 0
        %528 = vmatprep.subr.bf16.mxu0 0
        %529 = vmatpush1.bf16.msra.mxu0 0
        %530 = vmatprep.subr.bf16.mxu0 0
        %531 = vmatpush1.bf16.msra.mxu0 0
        %532 = vmatprep.subr.bf16.mxu0 0
        %533 = vmatpush1.bf16.msra.mxu0 0
        %534 = vmatprep.subr.bf16.mxu0 0
        %535 = vmatpush1.bf16.msra.mxu0 0
        %536 = vmatprep.mubr.bf16.mxu0 0
        %537 = vmatmul.mubr.bf16.gmra.mrb[0].mxu0 %v502
        %v538 = vpop.f32.mrb[0].mxu0
        %v539 = vadd.f32 %v486, %v538
        %v540 = vpop.f32.mrb[0].mxu0
        %v541 = vpop.f32.mrb[0].mxu0
        %v542 = vpop.f32.mrb[0].mxu0
        %543 = vdwg.mxu0
        %v544 = vld [vmem:[%s6] sm:$0xf]
        %v545 = vld [vmem:[%s6 + $0x4] sm:$0xf]
        %v546 = vld [vmem:[%s6 + $0x8] sm:$0xf]
        %v547 = vld [vmem:[%s6 + $0xc] sm:$0xf]
        %v548 = vld [vmem:[%s7] sm:$0x1]
        %v550 = vlaneseq
        %v551 = vshrl.u32 %v550, 7
        %v552 = vsub.s32 0, %v551
        %v553 = vrot.slane %v548, %v552
        %v559 = vunpack.c.l.b16 %v544
        %v560 = vunpack.c.l.b16 %v545
        %v561 = vunpack.c.l.b16 %v546
        %v562 = vunpack.c.l.b16 %v547
        %v563 = vpack.c.b16 %v560, %v559
        %v564 = vpack.c.b16 %v562, %v561
        %567 = vmatprep.subr.bf16.mxu0 0
        %568 = vmatpush1.bf16.msra.mxu0 %v563
        %569 = vmatprep.subr.bf16.mxu0 0
        %570 = vmatpush1.bf16.msra.mxu0 %v564
        %571 = vmatprep.subr.bf16.mxu0 0
        %572 = vmatpush1.bf16.msra.mxu0 0
        %573 = vmatprep.subr.bf16.mxu0 0
        %574 = vmatpush1.bf16.msra.mxu0 0
        %575 = vmatprep.subr.bf16.mxu0 0
        %576 = vmatpush1.bf16.msra.mxu0 0
        %577 = vmatprep.subr.bf16.mxu0 0
        %578 = vmatpush1.bf16.msra.mxu0 0
        %579 = vmatprep.subr.bf16.mxu0 0
        %580 = vmatpush1.bf16.msra.mxu0 0
        %581 = vmatprep.subr.bf16.mxu0 0
        %582 = vmatpush1.bf16.msra.mxu0 0
        %583 = vmatprep.subr.bf16.mxu0 0
        %584 = vmatpush1.bf16.msra.mxu0 0
        %585 = vmatprep.subr.bf16.mxu0 0
        %586 = vmatpush1.bf16.msra.mxu0 0
        %587 = vmatprep.subr.bf16.mxu0 0
        %588 = vmatpush1.bf16.msra.mxu0 0
        %589 = vmatprep.subr.bf16.mxu0 0
        %590 = vmatpush1.bf16.msra.mxu0 0
        %591 = vmatprep.subr.bf16.mxu0 0
        %592 = vmatpush1.bf16.msra.mxu0 0
        %593 = vmatprep.subr.bf16.mxu0 0
        %594 = vmatpush1.bf16.msra.mxu0 0
        %595 = vmatprep.subr.bf16.mxu0 0
        %596 = vmatpush1.bf16.msra.mxu0 0
        %597 = vmatprep.subr.bf16.mxu0 0
        %598 = vmatpush1.bf16.msra.mxu0 0
        %599 = vmatprep.mubr.bf16.mxu0 0
        %600 = vmatmul.mubr.bf16.gmra.mrb[0].mxu0 %v502
        %v601 = vpop.f32.mrb[0].mxu0
        %v602 = vadd.f32 %v553, %v601
        %v603 = vpop.f32.mrb[0].mxu0
        %v604 = vpop.f32.mrb[0].mxu0
        %v605 = vpop.f32.mrb[0].mxu0
        %606 = vdwg.mxu0
        %v607 = vld [vmem:[%s4] sm:$0xf]
        %v608 = vld [vmem:[%s4 + $0x4] sm:$0xf]
        %v609 = vld [vmem:[%s4 + $0x8] sm:$0xf]
        %v610 = vld [vmem:[%s4 + $0xc] sm:$0xf]
        %v611 = vld [vmem:[%s5] sm:$0x1]
        %v613 = vlaneseq
        %v614 = vshrl.u32 %v613, 7
        %v615 = vsub.s32 0, %v614
        %v616 = vrot.slane %v611, %v615
        %v622 = vunpack.c.l.b16 %v607
        %v623 = vunpack.c.l.b16 %v608
        %v624 = vunpack.c.l.b16 %v609
        %v625 = vunpack.c.l.b16 %v610
        %v626 = vpack.c.b16 %v623, %v622
        %v627 = vpack.c.b16 %v625, %v624
        %630 = vmatprep.subr.bf16.mxu0 0
        %631 = vmatpush1.bf16.msra.mxu0 %v626
        %632 = vmatprep.subr.bf16.mxu0 0
        %633 = vmatpush1.bf16.msra.mxu0 %v627
        %634 = vmatprep.subr.bf16.mxu0 0
        %635 = vmatpush1.bf16.msra.mxu0 0
        %636 = vmatprep.subr.bf16.mxu0 0
        %637 = vmatpush1.bf16.msra.mxu0 0
        %638 = vmatprep.subr.bf16.mxu0 0
        %639 = vmatpush1.bf16.msra.mxu0 0
        %640 = vmatprep.subr.bf16.mxu0 0
        %641 = vmatpush1.bf16.msra.mxu0 0
        %642 = vmatprep.subr.bf16.mxu0 0
        %643 = vmatpush1.bf16.msra.mxu0 0
        %644 = vmatprep.subr.bf16.mxu0 0
        %645 = vmatpush1.bf16.msra.mxu0 0
        %646 = vmatprep.subr.bf16.mxu0 0
        %647 = vmatpush1.bf16.msra.mxu0 0
        %648 = vmatprep.subr.bf16.mxu0 0
        %649 = vmatpush1.bf16.msra.mxu0 0
        %650 = vmatprep.subr.bf16.mxu0 0
        %651 = vmatpush1.bf16.msra.mxu0 0
        %652 = vmatprep.subr.bf16.mxu0 0
        %653 = vmatpush1.bf16.msra.mxu0 0
        %654 = vmatprep.subr.bf16.mxu0 0
        %655 = vmatpush1.bf16.msra.mxu0 0
        %656 = vmatprep.subr.bf16.mxu0 0
        %657 = vmatpush1.bf16.msra.mxu0 0
        %658 = vmatprep.subr.bf16.mxu0 0
        %659 = vmatpush1.bf16.msra.mxu0 0
        %660 = vmatprep.subr.bf16.mxu0 0
        %661 = vmatpush1.bf16.msra.mxu0 0
        %662 = vmatprep.mubr.bf16.mxu0 0
        %663 = vmatmul.mubr.bf16.gmra.mrb[0].mxu0 %v502
        %v664 = vpop.f32.mrb[0].mxu0
        %v665 = vadd.f32 %v616, %v664
        %v666 = vpop.f32.mrb[0].mxu0
        %v667 = vpop.f32.mrb[0].mxu0
        %v668 = vpop.f32.mrb[0].mxu0
        %669 = vdwg.mxu0
        %671 = vset.pattern.permute.xlu0 0
        %672 = vperm.xlu0 %671, %v475
        %v673 = vpop.permute.xlu0 %672
        %v675 = vadd.f32 %v665, %v673
        %vm676 = vcmask 31744
        %v677 = vsel %vm676, %v675, -inf
        %v678 = vrot.slane %v677, 4
        %v679 = vmax.f32 %v677, %v678
        %v680 = vrot.slane %v679, 2
        %v681 = vmax.f32 %v679, %v680
        %v682 = vrot.slane %v681, 1
        %v683 = vmax.f32 %v681, %v682
        %v684 = vsub.f32 %v675, %v683
        %v685 = vmul.f32 %v684, 1.442695
        %v686 = vpow.pop %v685
        %v687 = vsel %vm676, %v686, 0.0
        %v688 = vrot.slane %v687, 4
        %v689 = vadd.f32 %v687, %v688
        %v690 = vrot.slane %v689, 2
        %v691 = vadd.f32 %v689, %v690
        %v692 = vrot.slane %v691, 1
        %v693 = vadd.f32 %v691, %v692
        %v694 = vrcp.pop %v693
        %695 = vxpose.xlu0.b32.start [1/16] %v686, 128
        %696 = vxpose.xlu0.b32.cont [2/16] 0.0, 128
        %697 = vxpose.xlu0.b32.cont [3/16] 0.0, 128
        %698 = vxpose.xlu0.b32.cont [4/16] 0.0, 128
        %699 = vxpose.xlu0.b32.cont [5/16] 0.0, 128
        %700 = vxpose.xlu0.b32.cont [6/16] 0.0, 128
        %701 = vxpose.xlu0.b32.cont [7/16] 0.0, 128
        %702 = vxpose.xlu0.b32.cont [8/16] 0.0, 128
        %703 = vxpose.xlu0.b32.cont [9/16] 0.0, 128
        %704 = vxpose.xlu0.b32.cont [10/16] 0.0, 128
        %705 = vxpose.xlu0.b32.cont [11/16] 0.0, 128
        %706 = vxpose.xlu0.b32.cont [12/16] 0.0, 128
        %707 = vxpose.xlu0.b32.cont [13/16] 0.0, 128
        %708 = vxpose.xlu0.b32.cont [14/16] 0.0, 128
        %709 = vxpose.xlu0.b32.cont [15/16] 0.0, 128
        %710 = vxpose.xlu0.b32.end [16/16] 0.0, 128
        %v711 = vpop.trf.xlu0
        %v712 = vpop.trf.xlu0
        %v713 = vpop.trf.xlu0
        %v714 = vpop.trf.xlu0
        %v715 = vpop.trf.xlu0
        %v716 = vpop.trf.xlu0
        %v717 = vpop.trf.xlu0
        %v718 = vpop.trf.xlu0
        %v719 = vpop.trf.xlu0
        %v720 = vpop.trf.xlu0
        %v721 = vpop.trf.xlu0
        %v722 = vpop.trf.xlu0
        %v723 = vpop.trf.xlu0
        %v724 = vpop.trf.xlu0
        %v725 = vpop.trf.xlu0
        %v726 = vpop.trf.xlu0
        %vm727 = vcmask 64512
        %v729 = vsel %vm727, %v711, 0
        %731 = vmatprep.subr.mxu0 0.0
        %732 = vmatpush1.msra.mxu0 %v539
        %733 = vmatprep.subr.mxu0 0.0
        %734 = vmatpush1.msra.mxu0 0.0
        %735 = vmatprep.subr.mxu0 0.0
        %736 = vmatpush1.msra.mxu0 0.0
        %737 = vmatprep.subr.mxu0 0.0
        %738 = vmatpush1.msra.mxu0 0.0
        %739 = vmatprep.subr.mxu0 0.0
        %740 = vmatpush1.msra.mxu0 0.0
        %741 = vmatprep.subr.mxu0 0.0
        %742 = vmatpush1.msra.mxu0 0.0
        %743 = vmatprep.subr.mxu0 0.0
        %744 = vmatpush1.msra.mxu0 0.0
        %745 = vmatprep.subr.mxu0 0.0
        %746 = vmatpush1.msra.mxu0 0.0
        %747 = vmatprep.subr.mxu0 0.0
        %748 = vmatpush1.msra.mxu0 0.0
        %749 = vmatprep.subr.mxu0 0.0
        %750 = vmatpush1.msra.mxu0 0.0
        %751 = vmatprep.subr.mxu0 0.0
        %752 = vmatpush1.msra.mxu0 0.0
        %753 = vmatprep.subr.mxu0 0.0
        %754 = vmatpush1.msra.mxu0 0.0
        %755 = vmatprep.subr.mxu0 0.0
        %756 = vmatpush1.msra.mxu0 0.0
        %757 = vmatprep.subr.mxu0 0.0
        %758 = vmatpush1.msra.mxu0 0.0
        %759 = vmatprep.subr.mxu0 0.0
        %760 = vmatpush1.msra.mxu0 0.0
        %761 = vmatprep.subr.mxu0 0.0
        %762 = vmatpush1.msra.mxu0 0.0
        %763 = vmatprep.subr.mxu0 0.0
        %764 = vmatpush1.msra.mxu0 0.0
        %765 = vmatprep.subr.mxu0 0.0
        %766 = vmatpush1.msra.mxu0 0.0
        %767 = vmatprep.subr.mxu0 0.0
        %768 = vmatpush1.msra.mxu0 0.0
        %769 = vmatprep.subr.mxu0 0.0
        %770 = vmatpush1.msra.mxu0 0.0
        %771 = vmatprep.subr.mxu0 0.0
        %772 = vmatpush1.msra.mxu0 0.0
        %773 = vmatprep.subr.mxu0 0.0
        %774 = vmatpush1.msra.mxu0 0.0
        %775 = vmatprep.subr.mxu0 0.0
        %776 = vmatpush1.msra.mxu0 0.0
        %777 = vmatprep.subr.mxu0 0.0
        %778 = vmatpush1.msra.mxu0 0.0
        %779 = vmatprep.subr.mxu0 0.0
        %780 = vmatpush1.msra.mxu0 0.0
        %781 = vmatprep.subr.mxu0 0.0
        %782 = vmatpush1.msra.mxu0 0.0
        %783 = vmatprep.subr.mxu0 0.0
        %784 = vmatpush1.msra.mxu0 0.0
        %785 = vmatprep.subr.mxu0 0.0
        %786 = vmatpush1.msra.mxu0 0.0
        %787 = vmatprep.subr.mxu0 0.0
        %788 = vmatpush1.msra.mxu0 0.0
        %789 = vmatprep.subr.mxu0 0.0
        %790 = vmatpush1.msra.mxu0 0.0
        %791 = vmatprep.subr.mxu0 0.0
        %792 = vmatpush1.msra.mxu0 0.0
        %793 = vmatprep.subr.mxu0 0.0
        %794 = vmatpush1.msra.mxu0 0.0
        %795 = vmatprep.mubr.f32.mxu0 0.0
        %796 = vmatmul.mubr.f32.gmra.mrb[0].mxu0 %v729
        %v797 = vpop.f32.mrb[0].mxu0
        %v798 = vadd.f32 0.0, %v797
        %v799 = vpop.f32.mrb[0].mxu0
        %800 = vdwg.mxu0
        %v801 = vmul.f32 %v476, %v798
        %vm802 = vcmask 257024
        %v803 = vsel %vm802, %v801, 0.0
        %v804 = vrot.slane %v803, 4
        %v805 = vadd.f32 %v803, %v804
        %v806 = vrot.slane %v805, 2
        %v807 = vadd.f32 %v805, %v806
        %v808 = vrot.slane %v807, 1
        %v809 = vadd.f32 %v807, %v808
        %v811 = vsel %vm676, %v694, 0
        %vm813 = vcmask 1043456
        %v815 = vsel %vm813, %v476, 0
        %817 = vmatprep.subr.mxu0 0.0
        %818 = vmatpush1.msra.mxu0 %v815
        %819 = vmatprep.subr.mxu0 0.0
        %820 = vmatpush1.msra.mxu0 0.0
        %821 = vmatprep.subr.mxu0 0.0
        %822 = vmatpush1.msra.mxu0 0.0
        %823 = vmatprep.subr.mxu0 0.0
        %824 = vmatpush1.msra.mxu0 0.0
        %825 = vmatprep.subr.mxu0 0.0
        %826 = vmatpush1.msra.mxu0 0.0
        %827 = vmatprep.subr.mxu0 0.0
        %828 = vmatpush1.msra.mxu0 0.0
        %829 = vmatprep.subr.mxu0 0.0
        %830 = vmatpush1.msra.mxu0 0.0
        %831 = vmatprep.subr.mxu0 0.0
        %832 = vmatpush1.msra.mxu0 0.0
        %833 = vmatprep.subr.mxu0 0.0
        %834 = vmatpush1.msra.mxu0 0.0
        %835 = vmatprep.subr.mxu0 0.0
        %836 = vmatpush1.msra.mxu0 0.0
        %837 = vmatprep.subr.mxu0 0.0
        %838 = vmatpush1.msra.mxu0 0.0
        %839 = vmatprep.subr.mxu0 0.0
        %840 = vmatpush1.msra.mxu0 0.0
        %841 = vmatprep.subr.mxu0 0.0
        %842 = vmatpush1.msra.mxu0 0.0
        %843 = vmatprep.subr.mxu0 0.0
        %844 = vmatpush1.msra.mxu0 0.0
        %845 = vmatprep.subr.mxu0 0.0
        %846 = vmatpush1.msra.mxu0 0.0
        %847 = vmatprep.subr.mxu0 0.0
        %848 = vmatpush1.msra.mxu0 0.0
        %849 = vmatprep.subr.mxu0 0.0
        %850 = vmatpush1.msra.mxu0 0.0
        %851 = vmatprep.subr.mxu0 0.0
        %852 = vmatpush1.msra.mxu0 0.0
        %853 = vmatprep.subr.mxu0 0.0
        %854 = vmatpush1.msra.mxu0 0.0
        %855 = vmatprep.subr.mxu0 0.0
        %856 = vmatpush1.msra.mxu0 0.0
        %857 = vmatprep.subr.mxu0 0.0
        %858 = vmatpush1.msra.mxu0 0.0
        %859 = vmatprep.subr.mxu0 0.0
        %860 = vmatpush1.msra.mxu0 0.0
        %861 = vmatprep.subr.mxu0 0.0
        %862 = vmatpush1.msra.mxu0 0.0
        %863 = vmatprep.subr.mxu0 0.0
        %864 = vmatpush1.msra.mxu0 0.0
        %865 = vmatprep.subr.mxu0 0.0
        %866 = vmatpush1.msra.mxu0 0.0
        %867 = vmatprep.subr.mxu0 0.0
        %868 = vmatpush1.msra.mxu0 0.0
        %869 = vmatprep.subr.mxu0 0.0
        %870 = vmatpush1.msra.mxu0 0.0
        %871 = vmatprep.subr.mxu0 0.0
        %872 = vmatpush1.msra.mxu0 0.0
        %873 = vmatprep.subr.mxu0 0.0
        %874 = vmatpush1.msra.mxu0 0.0
        %875 = vmatprep.subr.mxu0 0.0
        %876 = vmatpush1.msra.mxu0 0.0
        %877 = vmatprep.subr.mxu0 0.0
        %878 = vmatpush1.msra.mxu0 0.0
        %879 = vmatprep.subr.mxu0 0.0
        %880 = vmatpush1.msra.mxu0 0.0
        %881 = vmatprep.mubr.f32.mxu0 0.0
        %882 = vmatmul.mubr.f32.gmra.mrb[0].mxu0 %v811
        %v883 = vpop.f32.mrb[0].mxu0
        %v884 = vadd.f32 0.0, %v883
        %v885 = vpop.f32.mrb[0].mxu0
        %886 = vdwg.mxu0
        %v887 = vmul.f32 %v809, %v884
        %v888 = vlaneseq
        %v889 = vshrl.u32 %v888, 7
        %v890 = vsub.s32 0, %v889
        %v891 = vrot.slane %v887, %v890
        %v892 = vmul.f32 %v602, %v891
        %v893 = vpack.c.bf16 %v892, %v892
        %v894 = vld [vmem:[%s8] sm:$0xf]
        %v895 = vld [vmem:[%s8 + $0x4] sm:$0xf]
        %v896 = vld [vmem:[%s8 + $0x8] sm:$0xf]
        %v897 = vld [vmem:[%s8 + $0xc] sm:$0xf]
        %v898 = vld [vmem:[%s9] sm:$0x1]
        %v900 = vlaneseq
        %v901 = vshrl.u32 %v900, 7
        %v902 = vsub.s32 0, %v901
        %v903 = vrot.slane %v898, %v902
        %v909 = vunpack.c.l.b16 %v894
        %v910 = vunpack.c.l.b16 %v895
        %v911 = vunpack.c.l.b16 %v896
        %v912 = vunpack.c.l.b16 %v897
        %v913 = vpack.c.b16 %v910, %v909
        %v914 = vpack.c.b16 %v912, %v911
        %v918 = vsel %vm500, %v893, 0
        %920 = vmatprep.subr.bf16.mxu0 0
        %921 = vmatpush1.bf16.msra.mxu0 %v913
        %922 = vmatprep.subr.bf16.mxu0 0
        %923 = vmatpush1.bf16.msra.mxu0 %v914
        %924 = vmatprep.subr.bf16.mxu0 0
        %925 = vmatpush1.bf16.msra.mxu0 0
        %926 = vmatprep.subr.bf16.mxu0 0
        %927 = vmatpush1.bf16.msra.mxu0 0
        %928 = vmatprep.subr.bf16.mxu0 0
        %929 = vmatpush1.bf16.msra.mxu0 0
        %930 = vmatprep.subr.bf16.mxu0 0
        %931 = vmatpush1.bf16.msra.mxu0 0
        %932 = vmatprep.subr.bf16.mxu0 0
        %933 = vmatpush1.bf16.msra.mxu0 0
        %934 = vmatprep.subr.bf16.mxu0 0
        %935 = vmatpush1.bf16.msra.mxu0 0
        %936 = vmatprep.subr.bf16.mxu0 0
        %937 = vmatpush1.bf16.msra.mxu0 0
        %938 = vmatprep.subr.bf16.mxu0 0
        %939 = vmatpush1.bf16.msra.mxu0 0
        %940 = vmatprep.subr.bf16.mxu0 0
        %941 = vmatpush1.bf16.msra.mxu0 0
        %942 = vmatprep.subr.bf16.mxu0 0
        %943 = vmatpush1.bf16.msra.mxu0 0
        %944 = vmatprep.subr.bf16.mxu0 0
        %945 = vmatpush1.bf16.msra.mxu0 0
        %946 = vmatprep.subr.bf16.mxu0 0
        %947 = vmatpush1.bf16.msra.mxu0 0
        %948 = vmatprep.subr.bf16.mxu0 0
        %949 = vmatpush1.bf16.msra.mxu0 0
        %950 = vmatprep.subr.bf16.mxu0 0
        %951 = vmatpush1.bf16.msra.mxu0 0
        %952 = vmatprep.mubr.bf16.mxu0 0
        %953 = vmatmul.mubr.bf16.gmra.mrb[0].mxu0 %v918
        %v954 = vpop.f32.mrb[0].mxu0
        %v955 = vadd.f32 %v903, %v954
        %v956 = vpop.f32.mrb[0].mxu0
        %v957 = vpop.f32.mrb[0].mxu0
        %v958 = vpop.f32.mrb[0].mxu0
        %959 = vdwg.mxu0
        %v960 = vadd.f32 %v955, %v673
        %v961 = vsel %vm676, %v960, -inf
        %v962 = vrot.slane %v961, 4
        %v963 = vmax.f32 %v961, %v962
        %v964 = vrot.slane %v963, 2
        %v965 = vmax.f32 %v963, %v964
        %v966 = vrot.slane %v965, 1
        %v967 = vmax.f32 %v965, %v966
        %v968 = vsub.f32 %v960, %v967
        %v969 = vmul.f32 %v968, 1.442695
        %v970 = vpow.pop %v969
        %v971 = vsel %vm676, %v970, 0.0
        %v972 = vrot.slane %v971, 4
        %v973 = vadd.f32 %v971, %v972
        %v974 = vrot.slane %v973, 2
        %v975 = vadd.f32 %v973, %v974
        %v976 = vrot.slane %v975, 1
        %v977 = vadd.f32 %v975, %v976
        %v978 = vrcp.pop %v977
        %979 = vxpose.xlu0.b32.start [1/16] %v970, 128
        %980 = vxpose.xlu0.b32.cont [2/16] 0.0, 128
        %981 = vxpose.xlu0.b32.cont [3/16] 0.0, 128
        %982 = vxpose.xlu0.b32.cont [4/16] 0.0, 128
        %983 = vxpose.xlu0.b32.cont [5/16] 0.0, 128
        %984 = vxpose.xlu0.b32.cont [6/16] 0.0, 128
        %985 = vxpose.xlu0.b32.cont [7/16] 0.0, 128
        %986 = vxpose.xlu0.b32.cont [8/16] 0.0, 128
        %987 = vxpose.xlu0.b32.cont [9/16] 0.0, 128
        %988 = vxpose.xlu0.b32.cont [10/16] 0.0, 128
        %989 = vxpose.xlu0.b32.cont [11/16] 0.0, 128
        %990 = vxpose.xlu0.b32.cont [12/16] 0.0, 128
        %991 = vxpose.xlu0.b32.cont [13/16] 0.0, 128
        %992 = vxpose.xlu0.b32.cont [14/16] 0.0, 128
        %993 = vxpose.xlu0.b32.cont [15/16] 0.0, 128
        %994 = vxpose.xlu0.b32.end [16/16] 0.0, 128
        %v995 = vpop.trf.xlu0
        %v996 = vpop.trf.xlu0
        %v997 = vpop.trf.xlu0
        %v998 = vpop.trf.xlu0
        %v999 = vpop.trf.xlu0
        %v1000 = vpop.trf.xlu0
        %v1001 = vpop.trf.xlu0
        %v1002 = vpop.trf.xlu0
        %v1003 = vpop.trf.xlu0
        %v1004 = vpop.trf.xlu0
        %v1005 = vpop.trf.xlu0
        %v1006 = vpop.trf.xlu0
        %v1007 = vpop.trf.xlu0
        %v1008 = vpop.trf.xlu0
        %v1009 = vpop.trf.xlu0
        %v1010 = vpop.trf.xlu0
        %v1012 = vsel %vm727, %v995, 0
        %1014 = vmatprep.subr.mxu0 0.0
        %1015 = vmatpush1.msra.mxu0 %v892
        %1016 = vmatprep.subr.mxu0 0.0
        %1017 = vmatpush1.msra.mxu0 0.0
        %1018 = vmatprep.subr.mxu0 0.0
        %1019 = vmatpush1.msra.mxu0 0.0
        %1020 = vmatprep.subr.mxu0 0.0
        %1021 = vmatpush1.msra.mxu0 0.0
        %1022 = vmatprep.subr.mxu0 0.0
        %1023 = vmatpush1.msra.mxu0 0.0
        %1024 = vmatprep.subr.mxu0 0.0
        %1025 = vmatpush1.msra.mxu0 0.0
        %1026 = vmatprep.subr.mxu0 0.0
        %1027 = vmatpush1.msra.mxu0 0.0
        %1028 = vmatprep.subr.mxu0 0.0
        %1029 = vmatpush1.msra.mxu0 0.0
        %1030 = vmatprep.subr.mxu0 0.0
        %1031 = vmatpush1.msra.mxu0 0.0
        %1032 = vmatprep.subr.mxu0 0.0
        %1033 = vmatpush1.msra.mxu0 0.0
        %1034 = vmatprep.subr.mxu0 0.0
        %1035 = vmatpush1.msra.mxu0 0.0
        %1036 = vmatprep.subr.mxu0 0.0
        %1037 = vmatpush1.msra.mxu0 0.0
        %1038 = vmatprep.subr.mxu0 0.0
        %1039 = vmatpush1.msra.mxu0 0.0
        %1040 = vmatprep.subr.mxu0 0.0
        %1041 = vmatpush1.msra.mxu0 0.0
        %1042 = vmatprep.subr.mxu0 0.0
        %1043 = vmatpush1.msra.mxu0 0.0
        %1044 = vmatprep.subr.mxu0 0.0
        %1045 = vmatpush1.msra.mxu0 0.0
        %1046 = vmatprep.subr.mxu0 0.0
        %1047 = vmatpush1.msra.mxu0 0.0
        %1048 = vmatprep.subr.mxu0 0.0
        %1049 = vmatpush1.msra.mxu0 0.0
        %1050 = vmatprep.subr.mxu0 0.0
        %1051 = vmatpush1.msra.mxu0 0.0
        %1052 = vmatprep.subr.mxu0 0.0
        %1053 = vmatpush1.msra.mxu0 0.0
        %1054 = vmatprep.subr.mxu0 0.0
        %1055 = vmatpush1.msra.mxu0 0.0
        %1056 = vmatprep.subr.mxu0 0.0
        %1057 = vmatpush1.msra.mxu0 0.0
        %1058 = vmatprep.subr.mxu0 0.0
        %1059 = vmatpush1.msra.mxu0 0.0
        %1060 = vmatprep.subr.mxu0 0.0
        %1061 = vmatpush1.msra.mxu0 0.0
        %1062 = vmatprep.subr.mxu0 0.0
        %1063 = vmatpush1.msra.mxu0 0.0
        %1064 = vmatprep.subr.mxu0 0.0
        %1065 = vmatpush1.msra.mxu0 0.0
        %1066 = vmatprep.subr.mxu0 0.0
        %1067 = vmatpush1.msra.mxu0 0.0
        %1068 = vmatprep.subr.mxu0 0.0
        %1069 = vmatpush1.msra.mxu0 0.0
        %1070 = vmatprep.subr.mxu0 0.0
        %1071 = vmatpush1.msra.mxu0 0.0
        %1072 = vmatprep.subr.mxu0 0.0
        %1073 = vmatpush1.msra.mxu0 0.0
        %1074 = vmatprep.subr.mxu0 0.0
        %1075 = vmatpush1.msra.mxu0 0.0
        %1076 = vmatprep.subr.mxu0 0.0
        %1077 = vmatpush1.msra.mxu0 0.0
        %1078 = vmatprep.mubr.f32.mxu0 0.0
        %1079 = vmatmul.mubr.f32.gmra.mrb[0].mxu0 %v1012
        %v1080 = vpop.f32.mrb[0].mxu0
        %v1081 = vadd.f32 0.0, %v1080
        %v1082 = vpop.f32.mrb[0].mxu0
        %1083 = vdwg.mxu0
        %v1084 = vmul.f32 %v476, %v1081
        %v1085 = vsel %vm802, %v1084, 0.0
        %v1086 = vrot.slane %v1085, 4
        %v1087 = vadd.f32 %v1085, %v1086
        %v1088 = vrot.slane %v1087, 2
        %v1089 = vadd.f32 %v1087, %v1088
        %v1090 = vrot.slane %v1089, 1
        %v1091 = vadd.f32 %v1089, %v1090
        %v1093 = vsel %vm676, %v978, 0
        %1095 = vmatprep.subr.mxu0 0.0
        %1096 = vmatpush1.msra.mxu0 %v815
        %1097 = vmatprep.subr.mxu0 0.0
        %1098 = vmatpush1.msra.mxu0 0.0
        %1099 = vmatprep.subr.mxu0 0.0
        %1100 = vmatpush1.msra.mxu0 0.0
        %1101 = vmatprep.subr.mxu0 0.0
        %1102 = vmatpush1.msra.mxu0 0.0
        %1103 = vmatprep.subr.mxu0 0.0
        %1104 = vmatpush1.msra.mxu0 0.0
        %1105 = vmatprep.subr.mxu0 0.0
        %1106 = vmatpush1.msra.mxu0 0.0
        %1107 = vmatprep.subr.mxu0 0.0
        %1108 = vmatpush1.msra.mxu0 0.0
        %1109 = vmatprep.subr.mxu0 0.0
        %1110 = vmatpush1.msra.mxu0 0.0
        %1111 = vmatprep.subr.mxu0 0.0
        %1112 = vmatpush1.msra.mxu0 0.0
        %1113 = vmatprep.subr.mxu0 0.0
        %1114 = vmatpush1.msra.mxu0 0.0
        %1115 = vmatprep.subr.mxu0 0.0
        %1116 = vmatpush1.msra.mxu0 0.0
        %1117 = vmatprep.subr.mxu0 0.0
        %1118 = vmatpush1.msra.mxu0 0.0
        %1119 = vmatprep.subr.mxu0 0.0
        %1120 = vmatpush1.msra.mxu0 0.0
        %1121 = vmatprep.subr.mxu0 0.0
        %1122 = vmatpush1.msra.mxu0 0.0
        %1123 = vmatprep.subr.mxu0 0.0
        %1124 = vmatpush1.msra.mxu0 0.0
        %1125 = vmatprep.subr.mxu0 0.0
        %1126 = vmatpush1.msra.mxu0 0.0
        %1127 = vmatprep.subr.mxu0 0.0
        %1128 = vmatpush1.msra.mxu0 0.0
        %1129 = vmatprep.subr.mxu0 0.0
        %1130 = vmatpush1.msra.mxu0 0.0
        %1131 = vmatprep.subr.mxu0 0.0
        %1132 = vmatpush1.msra.mxu0 0.0
        %1133 = vmatprep.subr.mxu0 0.0
        %1134 = vmatpush1.msra.mxu0 0.0
        %1135 = vmatprep.subr.mxu0 0.0
        %1136 = vmatpush1.msra.mxu0 0.0
        %1137 = vmatprep.subr.mxu0 0.0
        %1138 = vmatpush1.msra.mxu0 0.0
        %1139 = vmatprep.subr.mxu0 0.0
        %1140 = vmatpush1.msra.mxu0 0.0
        %1141 = vmatprep.subr.mxu0 0.0
        %1142 = vmatpush1.msra.mxu0 0.0
        %1143 = vmatprep.subr.mxu0 0.0
        %1144 = vmatpush1.msra.mxu0 0.0
        %1145 = vmatprep.subr.mxu0 0.0
        %1146 = vmatpush1.msra.mxu0 0.0
        %1147 = vmatprep.subr.mxu0 0.0
        %1148 = vmatpush1.msra.mxu0 0.0
        %1149 = vmatprep.subr.mxu0 0.0
        %1150 = vmatpush1.msra.mxu0 0.0
        %1151 = vmatprep.subr.mxu0 0.0
        %1152 = vmatpush1.msra.mxu0 0.0
        %1153 = vmatprep.subr.mxu0 0.0
        %1154 = vmatpush1.msra.mxu0 0.0
        %1155 = vmatprep.subr.mxu0 0.0
        %1156 = vmatpush1.msra.mxu0 0.0
        %1157 = vmatprep.subr.mxu0 0.0
        %1158 = vmatpush1.msra.mxu0 0.0
        %1159 = vmatprep.mubr.f32.mxu0 0.0
        %1160 = vmatmul.mubr.f32.gmra.mrb[0].mxu0 %v1093
        %v1161 = vpop.f32.mrb[0].mxu0
        %v1162 = vadd.f32 0.0, %v1161
        %v1163 = vpop.f32.mrb[0].mxu0
        %1164 = vdwg.mxu0
        %v1165 = vmul.f32 %v1091, %v1162
        %v1166 = vlaneseq
        %v1167 = vshrl.u32 %v1166, 7
        %v1168 = vsub.s32 0, %v1167
        %v1169 = vrot.slane %v1165, %v1168
        %v1170 = vmul.f32 %v539, %v1169
        %v1171 = vpack.c.bf16 %v1170, %v1170
        %v1172 = vld [vmem:[%s10] sm:$0xf]
        %v1173 = vld [vmem:[%s10 + $0x4] sm:$0xf]
        %v1174 = vld [vmem:[%s10 + $0x8] sm:$0xf]
        %v1175 = vld [vmem:[%s10 + $0xc] sm:$0xf]
        %v1176 = vld [vmem:[%s11] sm:$0x1]
        %v1178 = vlaneseq
        %v1179 = vshrl.u32 %v1178, 7
        %v1180 = vsub.s32 0, %v1179
        %v1181 = vrot.slane %v1176, %v1180
        %v1187 = vunpack.c.l.b16 %v1172
        %v1188 = vunpack.c.l.b16 %v1173
        %v1189 = vunpack.c.l.b16 %v1174
        %v1190 = vunpack.c.l.b16 %v1175
        %v1191 = vpack.c.b16 %v1188, %v1187
        %v1192 = vpack.c.b16 %v1190, %v1189
        %v1196 = vsel %vm500, %v1171, 0
        %1198 = vmatprep.subr.bf16.mxu0 0
        %1199 = vmatpush1.bf16.msra.mxu0 %v1191
        %1200 = vmatprep.subr.bf16.mxu0 0
        %1201 = vmatpush1.bf16.msra.mxu0 %v1192
        %1202 = vmatprep.subr.bf16.mxu0 0
        %1203 = vmatpush1.bf16.msra.mxu0 0
        %1204 = vmatprep.subr.bf16.mxu0 0
        %1205 = vmatpush1.bf16.msra.mxu0 0
        %1206 = vmatprep.subr.bf16.mxu0 0
        %1207 = vmatpush1.bf16.msra.mxu0 0
        %1208 = vmatprep.subr.bf16.mxu0 0
        %1209 = vmatpush1.bf16.msra.mxu0 0
        %1210 = vmatprep.subr.bf16.mxu0 0
        %1211 = vmatpush1.bf16.msra.mxu0 0
        %1212 = vmatprep.subr.bf16.mxu0 0
        %1213 = vmatpush1.bf16.msra.mxu0 0
        %1214 = vmatprep.subr.bf16.mxu0 0
        %1215 = vmatpush1.bf16.msra.mxu0 0
        %1216 = vmatprep.subr.bf16.mxu0 0
        %1217 = vmatpush1.bf16.msra.mxu0 0
        %1218 = vmatprep.subr.bf16.mxu0 0
        %1219 = vmatpush1.bf16.msra.mxu0 0
        %1220 = vmatprep.subr.bf16.mxu0 0
        %1221 = vmatpush1.bf16.msra.mxu0 0
        %1222 = vmatprep.subr.bf16.mxu0 0
        %1223 = vmatpush1.bf16.msra.mxu0 0
        %1224 = vmatprep.subr.bf16.mxu0 0
        %1225 = vmatpush1.bf16.msra.mxu0 0
        %1226 = vmatprep.subr.bf16.mxu0 0
        %1227 = vmatpush1.bf16.msra.mxu0 0
        %1228 = vmatprep.subr.bf16.mxu0 0
        %1229 = vmatpush1.bf16.msra.mxu0 0
        %1230 = vmatprep.mubr.bf16.mxu0 0
        %1231 = vmatmul.mubr.bf16.gmra.mrb[0].mxu0 %v1196
        %v1232 = vpop.f32.mrb[0].mxu0
        %v1233 = vadd.f32 %v1181, %v1232
        %v1234 = vpop.f32.mrb[0].mxu0
        %v1235 = vpop.f32.mrb[0].mxu0
        %v1236 = vpop.f32.mrb[0].mxu0
        %1237 = vdwg.mxu0
        %v1238 = vadd.f32 %v1233, %v539
        %1239 = vst.msk [vmem:[%s468] sm:$0xff] %vm500, %v1238
        %s1240 = sand.u32 %s321, 1
        %s1241 = scalar_lea.sflag [#allocation4], %s1240
        %s1242 = sand.u32 %s321, 1
        %s1243 = smul.addr %s1242, 8
        %s1244 = scalar_lea.vmem [#allocation5], %s1243
        // Predicated region
        $region77: #{tpu_custom_call.1} parent=71 // pred_check
          %p1245 = pneg %p331
        $region78: #{tpu_custom_call.1} parent=71 // pred_check_branch
          %1247 = sbr.rel (%p1245) target = $region80
        $region79: #{tpu_custom_call.1} parent=71 // pred_region
          %s1249 = ssub.s32 128, 128
          %1250 = vsyncadd %s1241, %s1249
          %s1251 = smul.addr %s30, 128
          %s1252 = scalar_lea.hbm %s13, %s1251
          %s1254 = sshll.u32 %s1244, 4
          %s1255 = int_to_ptr.vmem [resolvable:$true] %s1254
          %1257 = dma.vmem_to_hbm [thread:$0]  %s1255, 128, %s1252, %s1241
        $region80: #{tpu_custom_call.1} parent=71 // pred_fallthru
          _
      $region72: #{tpu_custom_call.1} parent=5 // pred_fallthru
        _
      %p1258 = scmp.le.s32.totalorder 2, %s25
      // Predicated region
      $region81: #{tpu_custom_call.1} parent=5 // pred_check
        %p1259 = pneg %p1258
      $region82: #{tpu_custom_call.1} parent=5 // pred_check_branch
        %1261 = sbr.rel (%p1259) target = $region84
      $region83: #{tpu_custom_call.1} parent=5 // pred_region
        %s1262 = ssub.s32 %s25, 2
        // Predicated region
        $region85: #{tpu_custom_call.1} parent=83 // pred_check
          %p1263 = pneg %p337
        $region86: #{tpu_custom_call.1} parent=83 // pred_check_branch
          %1265 = sbr.rel (%p1263) target = $region88
        $region87: #{tpu_custom_call.1} parent=83 // pred_region
          %s1266 = sand.u32 %s322, 1
          %s1267 = scalar_lea.sflag [#allocation4], %s1266
          %s1268 = sand.u32 %s322, 1
          %s1269 = smul.addr %s1268, 8
          %s1270 = scalar_lea.vmem [#allocation5], %s1269
          %1271 = dma.done %s1267, 128
        $region88: #{tpu_custom_call.1} parent=83 // pred_fallthru
          _
      $region84: #{tpu_custom_call.1} parent=5 // pred_fallthru
        _
    $region6: #{tpu_custom_call.1} parent=1 // loop_footer
      %s29 = sadd.s32 1, %s25
    $region7: #{tpu_custom_call.1} parent=1 // loop_footer_branch
      %24 = sbr.rel target = $region3
    $region8: #{tpu_custom_call.1} parent=1 // loop_exit
      _
    %1272 = vsyncpa [#allocation3], 1
    %s1273 = scalar_lea.sflag [#allocation3], 1
    %1274 = vsyncpa %s1273, 1
    %1275 = vsyncpa [#allocation4], 1
    %s1276 = scalar_lea.sflag [#allocation4], 1
    %1277 = vsyncpa %s1276, 1

</llo_original>
